<compile_context>
chip_gen: v6e
topology: v6e:2x2x1
jax: 0.10.0
libtpu: 0.0.40
codegen_flags: <defaults>
</compile_context>

<pallas_src>
import jax
import jax.numpy as jnp
import numpy as np
from jax import lax
from jax.experimental import pallas as pl
from jax.experimental.pallas import tpu as pltpu

N = 16            # number of graph nodes
C = 8             # channels
H = 12            # GAT attention heads
E = 40            # number of random directed edges
NEG_SLOPE = 0.2   # GATConv LeakyReLU slope

HC = H * C                 # 96
H2 = 2 * H                 # 24
C2 = 2 * C                 # 16
SLAB_ROWS = 3 * C + 3      # 27
SLAB_COLS = HC + H2 + C2   # 136


def encoder_kernel(x_ref, adj_ref, p_ref, out_ref):
    x = x_ref[...]        # (N, C)
    adj = adj_ref[...]    # (N, N): adj[i, j] = 1 iff j -> i (incl. self loops)
    slab = p_ref[...]     # (27, 136) packed parameters

    # ---- unpack the parameter slab (static slices) ----
    wg_flat = slab[0:C, 0:HC]                          # (C, H*C) fused GAT weights
    att_p = slab[0:C, HC:HC + H2]                      # (C, 2H)  folded a_src|a_dst
    w1 = slab[0:C, HC + H2:HC + H2 + C2]               # (C, 2C)  fcc1 weight
    w2 = slab[C:3 * C, 0:C]                            # (2C, C)  fcc2 weight
    bg = slab[3 * C:3 * C + 1, 0:C]                    # (1, C)   GAT bias
    b1 = slab[3 * C + 1:3 * C + 2, 0:C2]               # (1, 2C)  fcc1 bias
    b2 = slab[3 * C + 2:3 * C + 3, 0:C]                # (1, C)   fcc2 bias

    # ---- GATConv ----
    # fused per-head projections: h_all[n, h*C + c] = (W_h x_n)[c]
    h_all = jnp.dot(x, wg_flat, preferred_element_type=jnp.float32)      # (N, H*C)

    # all per-head attention logits in one MXU pass:
    #   alpha_t[h,      j] = a_src_h . (W_h x_j)
    #   alpha_t[H + h,  i] = a_dst_h . (W_h x_i)
    alpha_t = lax.dot_general(att_p, x, (((0,), (1,)), ((), ())),
                              preferred_element_type=jnp.float32)        # (2H, N)
    a_src_t = alpha_t[:H, :]                                             # (H, N)
    a_dst_t = alpha_t[H:, :]                                             # (H, N)

    # batched softmax over sources j for ALL heads at once
    e = a_dst_t[:, :, None] + a_src_t[:, None, :]                        # (H, N, N)
    e = jnp.where(e > 0.0, e, NEG_SLOPE * e)                             # LeakyReLU(0.2)
    e = jnp.where(adj[None, :, :] > 0.0, e, -1e30)                       # mask non-edges
    e = e - jnp.max(e, axis=-1, keepdims=True)
    p = jnp.exp(e)                     # masked entries underflow to 0 (self-loop => rowmax finite)
    denom = jnp.sum(p, axis=-1, keepdims=True)                           # (H, N, 1)
    attn = p * pl.reciprocal(denom, approx=False)                        # (H, N, N)

    # per-head aggregation over the fused projection, then mean over heads + bias
    acc = jnp.zeros((N, C), jnp.float32)
    for hh in range(H):                                                  # static unroll
        acc = acc + jnp.dot(attn[hh], h_all[:, hh * C:(hh + 1) * C],
                            preferred_element_type=jnp.float32)
    gat = acc * (1.0 / H) + bg

    # MultiAttentionBlock residual ReLU
    y = jnp.maximum(x + gat, 0.0)

    # ---- MLPBlock: relu(fcc1) -> fcc2 -> relu(residual) ----
    h1 = jnp.maximum(jnp.dot(y, w1, preferred_element_type=jnp.float32) + b1, 0.0)
    h2 = jnp.dot(h1, w2, preferred_element_type=jnp.float32) + b2
    out_ref[...] = jnp.maximum(y + h2, 0.0)


def pack_params(params):
    """Host-side packing of all parameters into one (27, 136) slab (one DMA)."""
    wg, a_src, a_dst = params["wg"], params["a_src"], params["a_dst"]
    # fused projection weight: wg_flat[k, h*C + c] = wg[h, k, c]
    wg_flat = jnp.transpose(wg, (1, 0, 2)).reshape(C, HC)                # (C, H*C)
    # fold attention vectors into input space: ws[k, h] = sum_c wg[h,k,c]*a_src[h,c]
    ws = jnp.einsum("hkc,hc->kh", wg, a_src)                             # (C, H)
    wd = jnp.einsum("hkc,hc->kh", wg, a_dst)                             # (C, H)
    att_p = jnp.concatenate([ws, wd], axis=1)                            # (C, 2H)

    slab = jnp.zeros((SLAB_ROWS, SLAB_COLS), jnp.float32)
    slab = slab.at[0:C, :].set(
        jnp.concatenate([wg_flat, att_p, params["w1"]], axis=1))         # rows 0:8
    slab = slab.at[C:3 * C, 0:C].set(params["w2"])                       # rows 8:24
    slab = slab.at[3 * C, 0:C].set(params["bg"][0])                      # row 24
    slab = slab.at[3 * C + 1, 0:C2].set(params["b1"][0])                 # row 25
    slab = slab.at[3 * C + 2, 0:C].set(params["b2"][0])                  # row 26
    return slab


@jax.jit
def encoder_block(x, adj, params):
    slab = pack_params(params)
    vmem = pl.BlockSpec(memory_space=pltpu.MemorySpace.VMEM)
    # TODO(synk): when applying this block to many graphs/layers, batch them with a
    # grid over the batch axis (dimension_semantics=("parallel",)) and a lane-dense
    # output to amortize the fixed per-call DMA/step overhead.
    return pl.pallas_call(
        encoder_kernel,
        out_shape=jax.ShapeDtypeStruct((N, C), jnp.float32),
        in_specs=[vmem, vmem, vmem],
        out_specs=vmem,
    )(x, adj, slab)


def reference(x, adj, p):
    """Pure-JAX reference with identical semantics (for correctness check)."""
    hr = jnp.einsum("nc,hcd->nhd", x, p["wg"])            # (N, H, C)
    a_s = jnp.sum(hr * p["a_src"][None], axis=-1)         # (N, H)
    a_d = jnp.sum(hr * p["a_dst"][None], axis=-1)         # (N, H)
    e = a_d[:, None, :] + a_s[None, :, :]                 # (N, N, H), e[i, j, h]
    e = jnp.where(e > 0, e, NEG_SLOPE * e)
    m = adj[:, :, None] > 0
    e = jnp.where(m, e, -1e30)
    e = e - jnp.max(e, axis=1, keepdims=True)
    pr = jnp.where(m, jnp.exp(e), 0.0)
    attn = pr / jnp.sum(pr, axis=1, keepdims=True)
    gat = jnp.einsum("ijh,jhc->ihc", attn, hr).mean(axis=1) + p["bg"][0]
    y = jnp.maximum(x + gat, 0.0)
    h1 = jnp.maximum(y @ p["w1"] + p["b1"][0], 0.0)
    h2 = h1 @ p["w2"] + p["b2"][0]
    return jnp.maximum(y + h2, 0.0)


if __name__ == "__main__":
    key = jax.random.PRNGKey(0)
    keys = jax.random.split(key, 11)

    # Node features
    x = jax.random.normal(keys[0], (N, C), jnp.float32)

    # Random directed edge list [2, E] in PyG convention (row 0 = src, row 1 = dst)
    src = jax.random.randint(keys[1], (E,), 0, N)
    dst = jax.random.randint(keys[2], (E,), 0, N)
    edge_index = jnp.stack([src, dst])
    # Glue: scatter edge list into a dense adjacency mask, add self loops
    # (GATConv default add_self_loops=True; guarantees every softmax row is valid).
    adj = jnp.zeros((N, N), jnp.float32).at[dst, src].set(1.0)
    adj = jnp.maximum(adj, jnp.eye(N, dtype=jnp.float32))

    # Deterministic synthetic parameters.
    s = 0.1
    params = dict(
        wg=s * jax.random.normal(keys[3], (H, C, C), jnp.float32),       # per-head (in, out)
        a_src=s * jax.random.normal(keys[4], (H, C), jnp.float32),       # attention vec (src)
        a_dst=s * jax.random.normal(keys[5], (H, C), jnp.float32),       # attention vec (dst)
        bg=s * jax.random.normal(keys[6], (1, C), jnp.float32),          # GATConv bias
        w1=s * jax.random.normal(keys[7], (C, 2 * C), jnp.float32),      # fcc1 weight
        b1=s * jax.random.normal(keys[8], (1, 2 * C), jnp.float32),      # fcc1 bias
        w2=s * jax.random.normal(keys[9], (2 * C, C), jnp.float32),      # fcc2 weight
        b2=s * jax.random.normal(keys[10], (1, C), jnp.float32),         # fcc2 bias
    )

    out = jax.block_until_ready(encoder_block(x, adj, params))
    ref = jax.block_until_ready(reference(x, adj, params))
    np.testing.assert_allclose(np.asarray(out), np.asarray(ref), rtol=1e-4, atol=1e-4)
    print("KERNEL_OK")
</pallas_src>

<mosaic_0001>
module attributes {stable_mosaic.version = 11 : i64} {
  func.func @encoder_kernel(%arg0: memref<16x8xf32, #tpu.memory_space<vmem>>, %arg1: memref<16x16xf32, #tpu.memory_space<vmem>>, %arg2: memref<27x136xf32, #tpu.memory_space<vmem>>, %arg3: memref<16x8xf32, #tpu.memory_space<vmem>>) attributes {dimension_semantics = [], scalar_prefetch = 0 : i64, scratch_operands = 0 : i64, tpu.core_type = #tpu.core_type<tc>} {
    %c0 = arith.constant 0 : index
    %c0_0 = arith.constant 0 : index
    %0 = vector.load %arg0[%c0, %c0_0] : memref<16x8xf32, #tpu.memory_space<vmem>>, vector<16x8xf32>
    %c0_1 = arith.constant 0 : index
    %c0_2 = arith.constant 0 : index
    %1 = vector.load %arg1[%c0_1, %c0_2] : memref<16x16xf32, #tpu.memory_space<vmem>>, vector<16x16xf32>
    %c0_3 = arith.constant 0 : index
    %c0_4 = arith.constant 0 : index
    %2 = vector.load %arg2[%c0_3, %c0_4] : memref<27x136xf32, #tpu.memory_space<vmem>>, vector<27x136xf32>
    %3 = vector.extract_strided_slice %2 {offsets = [0, 0], sizes = [8, 96], strides = [1, 1]} : vector<27x136xf32> to vector<8x96xf32>
    %4 = vector.extract_strided_slice %2 {offsets = [0, 96], sizes = [8, 24], strides = [1, 1]} : vector<27x136xf32> to vector<8x24xf32>
    %5 = vector.extract_strided_slice %2 {offsets = [0, 120], sizes = [8, 16], strides = [1, 1]} : vector<27x136xf32> to vector<8x16xf32>
    %6 = vector.extract_strided_slice %2 {offsets = [8, 0], sizes = [16, 8], strides = [1, 1]} : vector<27x136xf32> to vector<16x8xf32>
    %7 = vector.extract_strided_slice %2 {offsets = [24, 0], sizes = [1, 8], strides = [1, 1]} : vector<27x136xf32> to vector<1x8xf32>
    %8 = vector.extract_strided_slice %2 {offsets = [25, 0], sizes = [1, 16], strides = [1, 1]} : vector<27x136xf32> to vector<1x16xf32>
    %9 = vector.extract_strided_slice %2 {offsets = [26, 0], sizes = [1, 8], strides = [1, 1]} : vector<27x136xf32> to vector<1x8xf32>
    %cst = arith.constant dense<0.000000e+00> : vector<16x96xf32>
    %10 = tpu.matmul %0, %3, %cst {dimension_numbers = #tpu.dot_dimension_numbers<[1], [0], [0], [1], [0, 0, 1, 1], [], []>} : vector<16x8xf32>, vector<8x96xf32>, vector<16x96xf32> -> vector<16x96xf32>
    %cst_5 = arith.constant dense<0.000000e+00> : vector<24x16xf32>
    %11 = tpu.matmul %4, %0, %cst_5 {dimension_numbers = #tpu.dot_dimension_numbers<[0], [1], [1], [0], [0, 1, 1, 0], [], []>} : vector<8x24xf32>, vector<16x8xf32>, vector<24x16xf32> -> vector<24x16xf32>
    %12 = vector.extract_strided_slice %11 {offsets = [0, 0], sizes = [12, 16], strides = [1, 1]} : vector<24x16xf32> to vector<12x16xf32>
    %13 = vector.extract_strided_slice %11 {offsets = [12, 0], sizes = [12, 16], strides = [1, 1]} : vector<24x16xf32> to vector<12x16xf32>
    %14 = vector.shape_cast %13 : vector<12x16xf32> to vector<12x16x1xf32>
    %15 = vector.shape_cast %12 : vector<12x16xf32> to vector<12x1x16xf32>
    %16 = vector.broadcast %14 : vector<12x16x1xf32> to vector<12x16x16xf32>
    %17 = vector.broadcast %15 : vector<12x1x16xf32> to vector<12x16x16xf32>
    %18 = arith.addf %16, %17 : vector<12x16x16xf32>
    %cst_6 = arith.constant 0.000000e+00 : f32
    %19 = vector.broadcast %cst_6 : f32 to vector<12x16x16xf32>
    %20 = arith.cmpf ogt, %18, %19 : vector<12x16x16xf32>
    %cst_7 = arith.constant 2.000000e-01 : f32
    %21 = vector.broadcast %cst_7 : f32 to vector<12x16x16xf32>
    %22 = arith.mulf %21, %18 : vector<12x16x16xf32>
    %23 = arith.select %20, %18, %22 : vector<12x16x16xi1>, vector<12x16x16xf32>
    %24 = vector.shape_cast %1 : vector<16x16xf32> to vector<1x16x16xf32>
    %cst_8 = arith.constant 0.000000e+00 : f32
    %25 = vector.broadcast %cst_8 : f32 to vector<1x16x16xf32>
    %26 = arith.cmpf ogt, %24, %25 : vector<1x16x16xf32>
    %cst_9 = arith.constant -1.000000e+30 : f32
    %27 = vector.shape_cast %26 : vector<1x16x16xi1> to vector<1x16x16xi1>
    %28 = vector.broadcast %27 : vector<1x16x16xi1> to vector<12x16x16xi1>
    %29 = vector.broadcast %cst_9 : f32 to vector<12x16x16xf32>
    %30 = arith.select %28, %23, %29 : vector<12x16x16xi1>, vector<12x16x16xf32>
    %cst_10 = arith.constant dense<0xFF800000> : vector<12x16xf32>
    %31 = vector.multi_reduction <maximumf>, %30, %cst_10 [2] : vector<12x16x16xf32> to vector<12x16xf32>
    %32 = vector.shape_cast %31 : vector<12x16xf32> to vector<12x16x1xf32>
    %33 = vector.broadcast %32 : vector<12x16x1xf32> to vector<12x16x16xf32>
    %34 = arith.subf %30, %33 : vector<12x16x16xf32>
    %35 = math.exp %34 : vector<12x16x16xf32>
    %cst_11 = arith.constant dense<0.000000e+00> : vector<12x16xf32>
    %36 = vector.multi_reduction <add>, %35, %cst_11 [2] : vector<12x16x16xf32> to vector<12x16xf32>
    %37 = vector.shape_cast %36 : vector<12x16xf32> to vector<12x16x1xf32>
    %38 = tpu.reciprocal %37 : vector<12x16x1xf32> -> vector<12x16x1xf32>
    %39 = vector.broadcast %38 : vector<12x16x1xf32> to vector<12x16x16xf32>
    %40 = arith.mulf %35, %39 : vector<12x16x16xf32>
    %cst_12 = arith.constant 0.000000e+00 : f32
    %41 = vector.broadcast %cst_12 : f32 to vector<16x8xf32>
    %42 = vector.extract_strided_slice %40 {offsets = [0, 0, 0], sizes = [1, 16, 16], strides = [1, 1, 1]} : vector<12x16x16xf32> to vector<1x16x16xf32>
    %43 = vector.shape_cast %42 : vector<1x16x16xf32> to vector<16x16xf32>
    %44 = vector.extract_strided_slice %10 {offsets = [0, 0], sizes = [16, 8], strides = [1, 1]} : vector<16x96xf32> to vector<16x8xf32>
    %cst_13 = arith.constant dense<0.000000e+00> : vector<16x8xf32>
    %45 = tpu.matmul %43, %44, %cst_13 {dimension_numbers = #tpu.dot_dimension_numbers<[1], [0], [0], [1], [0, 0, 1, 1], [], []>} : vector<16x16xf32>, vector<16x8xf32>, vector<16x8xf32> -> vector<16x8xf32>
    %46 = arith.addf %41, %45 : vector<16x8xf32>
    %47 = vector.extract_strided_slice %40 {offsets = [1, 0, 0], sizes = [1, 16, 16], strides = [1, 1, 1]} : vector<12x16x16xf32> to vector<1x16x16xf32>
    %48 = vector.shape_cast %47 : vector<1x16x16xf32> to vector<16x16xf32>
    %49 = vector.extract_strided_slice %10 {offsets = [0, 8], sizes = [16, 8], strides = [1, 1]} : vector<16x96xf32> to vector<16x8xf32>
    %cst_14 = arith.constant dense<0.000000e+00> : vector<16x8xf32>
    %50 = tpu.matmul %48, %49, %cst_14 {dimension_numbers = #tpu.dot_dimension_numbers<[1], [0], [0], [1], [0, 0, 1, 1], [], []>} : vector<16x16xf32>, vector<16x8xf32>, vector<16x8xf32> -> vector<16x8xf32>
    %51 = arith.addf %46, %50 : vector<16x8xf32>
    %52 = vector.extract_strided_slice %40 {offsets = [2, 0, 0], sizes = [1, 16, 16], strides = [1, 1, 1]} : vector<12x16x16xf32> to vector<1x16x16xf32>
    %53 = vector.shape_cast %52 : vector<1x16x16xf32> to vector<16x16xf32>
    %54 = vector.extract_strided_slice %10 {offsets = [0, 16], sizes = [16, 8], strides = [1, 1]} : vector<16x96xf32> to vector<16x8xf32>
    %cst_15 = arith.constant dense<0.000000e+00> : vector<16x8xf32>
    %55 = tpu.matmul %53, %54, %cst_15 {dimension_numbers = #tpu.dot_dimension_numbers<[1], [0], [0], [1], [0, 0, 1, 1], [], []>} : vector<16x16xf32>, vector<16x8xf32>, vector<16x8xf32> -> vector<16x8xf32>
    %56 = arith.addf %51, %55 : vector<16x8xf32>
    %57 = vector.extract_strided_slice %40 {offsets = [3, 0, 0], sizes = [1, 16, 16], strides = [1, 1, 1]} : vector<12x16x16xf32> to vector<1x16x16xf32>
    %58 = vector.shape_cast %57 : vector<1x16x16xf32> to vector<16x16xf32>
    %59 = vector.extract_strided_slice %10 {offsets = [0, 24], sizes = [16, 8], strides = [1, 1]} : vector<16x96xf32> to vector<16x8xf32>
    %cst_16 = arith.constant dense<0.000000e+00> : vector<16x8xf32>
    %60 = tpu.matmul %58, %59, %cst_16 {dimension_numbers = #tpu.dot_dimension_numbers<[1], [0], [0], [1], [0, 0, 1, 1], [], []>} : vector<16x16xf32>, vector<16x8xf32>, vector<16x8xf32> -> vector<16x8xf32>
    %61 = arith.addf %56, %60 : vector<16x8xf32>
    %62 = vector.extract_strided_slice %40 {offsets = [4, 0, 0], sizes = [1, 16, 16], strides = [1, 1, 1]} : vector<12x16x16xf32> to vector<1x16x16xf32>
    %63 = vector.shape_cast %62 : vector<1x16x16xf32> to vector<16x16xf32>
    %64 = vector.extract_strided_slice %10 {offsets = [0, 32], sizes = [16, 8], strides = [1, 1]} : vector<16x96xf32> to vector<16x8xf32>
    %cst_17 = arith.constant dense<0.000000e+00> : vector<16x8xf32>
    %65 = tpu.matmul %63, %64, %cst_17 {dimension_numbers = #tpu.dot_dimension_numbers<[1], [0], [0], [1], [0, 0, 1, 1], [], []>} : vector<16x16xf32>, vector<16x8xf32>, vector<16x8xf32> -> vector<16x8xf32>
    %66 = arith.addf %61, %65 : vector<16x8xf32>
    %67 = vector.extract_strided_slice %40 {offsets = [5, 0, 0], sizes = [1, 16, 16], strides = [1, 1, 1]} : vector<12x16x16xf32> to vector<1x16x16xf32>
    %68 = vector.shape_cast %67 : vector<1x16x16xf32> to vector<16x16xf32>
    %69 = vector.extract_strided_slice %10 {offsets = [0, 40], sizes = [16, 8], strides = [1, 1]} : vector<16x96xf32> to vector<16x8xf32>
    %cst_18 = arith.constant dense<0.000000e+00> : vector<16x8xf32>
    %70 = tpu.matmul %68, %69, %cst_18 {dimension_numbers = #tpu.dot_dimension_numbers<[1], [0], [0], [1], [0, 0, 1, 1], [], []>} : vector<16x16xf32>, vector<16x8xf32>, vector<16x8xf32> -> vector<16x8xf32>
    %71 = arith.addf %66, %70 : vector<16x8xf32>
    %72 = vector.extract_strided_slice %40 {offsets = [6, 0, 0], sizes = [1, 16, 16], strides = [1, 1, 1]} : vector<12x16x16xf32> to vector<1x16x16xf32>
    %73 = vector.shape_cast %72 : vector<1x16x16xf32> to vector<16x16xf32>
    %74 = vector.extract_strided_slice %10 {offsets = [0, 48], sizes = [16, 8], strides = [1, 1]} : vector<16x96xf32> to vector<16x8xf32>
    %cst_19 = arith.constant dense<0.000000e+00> : vector<16x8xf32>
    %75 = tpu.matmul %73, %74, %cst_19 {dimension_numbers = #tpu.dot_dimension_numbers<[1], [0], [0], [1], [0, 0, 1, 1], [], []>} : vector<16x16xf32>, vector<16x8xf32>, vector<16x8xf32> -> vector<16x8xf32>
    %76 = arith.addf %71, %75 : vector<16x8xf32>
    %77 = vector.extract_strided_slice %40 {offsets = [7, 0, 0], sizes = [1, 16, 16], strides = [1, 1, 1]} : vector<12x16x16xf32> to vector<1x16x16xf32>
    %78 = vector.shape_cast %77 : vector<1x16x16xf32> to vector<16x16xf32>
    %79 = vector.extract_strided_slice %10 {offsets = [0, 56], sizes = [16, 8], strides = [1, 1]} : vector<16x96xf32> to vector<16x8xf32>
    %cst_20 = arith.constant dense<0.000000e+00> : vector<16x8xf32>
    %80 = tpu.matmul %78, %79, %cst_20 {dimension_numbers = #tpu.dot_dimension_numbers<[1], [0], [0], [1], [0, 0, 1, 1], [], []>} : vector<16x16xf32>, vector<16x8xf32>, vector<16x8xf32> -> vector<16x8xf32>
    %81 = arith.addf %76, %80 : vector<16x8xf32>
    %82 = vector.extract_strided_slice %40 {offsets = [8, 0, 0], sizes = [1, 16, 16], strides = [1, 1, 1]} : vector<12x16x16xf32> to vector<1x16x16xf32>
    %83 = vector.shape_cast %82 : vector<1x16x16xf32> to vector<16x16xf32>
    %84 = vector.extract_strided_slice %10 {offsets = [0, 64], sizes = [16, 8], strides = [1, 1]} : vector<16x96xf32> to vector<16x8xf32>
    %cst_21 = arith.constant dense<0.000000e+00> : vector<16x8xf32>
    %85 = tpu.matmul %83, %84, %cst_21 {dimension_numbers = #tpu.dot_dimension_numbers<[1], [0], [0], [1], [0, 0, 1, 1], [], []>} : vector<16x16xf32>, vector<16x8xf32>, vector<16x8xf32> -> vector<16x8xf32>
    %86 = arith.addf %81, %85 : vector<16x8xf32>
    %87 = vector.extract_strided_slice %40 {offsets = [9, 0, 0], sizes = [1, 16, 16], strides = [1, 1, 1]} : vector<12x16x16xf32> to vector<1x16x16xf32>
    %88 = vector.shape_cast %87 : vector<1x16x16xf32> to vector<16x16xf32>
    %89 = vector.extract_strided_slice %10 {offsets = [0, 72], sizes = [16, 8], strides = [1, 1]} : vector<16x96xf32> to vector<16x8xf32>
    %cst_22 = arith.constant dense<0.000000e+00> : vector<16x8xf32>
    %90 = tpu.matmul %88, %89, %cst_22 {dimension_numbers = #tpu.dot_dimension_numbers<[1], [0], [0], [1], [0, 0, 1, 1], [], []>} : vector<16x16xf32>, vector<16x8xf32>, vector<16x8xf32> -> vector<16x8xf32>
    %91 = arith.addf %86, %90 : vector<16x8xf32>
    %92 = vector.extract_strided_slice %40 {offsets = [10, 0, 0], sizes = [1, 16, 16], strides = [1, 1, 1]} : vector<12x16x16xf32> to vector<1x16x16xf32>
    %93 = vector.shape_cast %92 : vector<1x16x16xf32> to vector<16x16xf32>
    %94 = vector.extract_strided_slice %10 {offsets = [0, 80], sizes = [16, 8], strides = [1, 1]} : vector<16x96xf32> to vector<16x8xf32>
    %cst_23 = arith.constant dense<0.000000e+00> : vector<16x8xf32>
    %95 = tpu.matmul %93, %94, %cst_23 {dimension_numbers = #tpu.dot_dimension_numbers<[1], [0], [0], [1], [0, 0, 1, 1], [], []>} : vector<16x16xf32>, vector<16x8xf32>, vector<16x8xf32> -> vector<16x8xf32>
    %96 = arith.addf %91, %95 : vector<16x8xf32>
    %97 = vector.extract_strided_slice %40 {offsets = [11, 0, 0], sizes = [1, 16, 16], strides = [1, 1, 1]} : vector<12x16x16xf32> to vector<1x16x16xf32>
    %98 = vector.shape_cast %97 : vector<1x16x16xf32> to vector<16x16xf32>
    %99 = vector.extract_strided_slice %10 {offsets = [0, 88], sizes = [16, 8], strides = [1, 1]} : vector<16x96xf32> to vector<16x8xf32>
    %cst_24 = arith.constant dense<0.000000e+00> : vector<16x8xf32>
    %100 = tpu.matmul %98, %99, %cst_24 {dimension_numbers = #tpu.dot_dimension_numbers<[1], [0], [0], [1], [0, 0, 1, 1], [], []>} : vector<16x16xf32>, vector<16x8xf32>, vector<16x8xf32> -> vector<16x8xf32>
    %101 = arith.addf %96, %100 : vector<16x8xf32>
    %cst_25 = arith.constant 0.0833333358 : f32
    %102 = vector.broadcast %cst_25 : f32 to vector<16x8xf32>
    %103 = arith.mulf %101, %102 : vector<16x8xf32>
    %104 = vector.broadcast %7 : vector<1x8xf32> to vector<16x8xf32>
    %105 = arith.addf %103, %104 : vector<16x8xf32>
    %106 = arith.addf %0, %105 : vector<16x8xf32>
    %cst_26 = arith.constant 0.000000e+00 : f32
    %107 = vector.broadcast %cst_26 : f32 to vector<16x8xf32>
    %108 = arith.maximumf %106, %107 : vector<16x8xf32>
    %cst_27 = arith.constant dense<0.000000e+00> : vector<16x16xf32>
    %109 = tpu.matmul %108, %5, %cst_27 {dimension_numbers = #tpu.dot_dimension_numbers<[1], [0], [0], [1], [0, 0, 1, 1], [], []>} : vector<16x8xf32>, vector<8x16xf32>, vector<16x16xf32> -> vector<16x16xf32>
    %110 = vector.broadcast %8 : vector<1x16xf32> to vector<16x16xf32>
    %111 = arith.addf %109, %110 : vector<16x16xf32>
    %cst_28 = arith.constant 0.000000e+00 : f32
    %112 = vector.broadcast %cst_28 : f32 to vector<16x16xf32>
    %113 = arith.maximumf %111, %112 : vector<16x16xf32>
    %cst_29 = arith.constant dense<0.000000e+00> : vector<16x8xf32>
    %114 = tpu.matmul %113, %6, %cst_29 {dimension_numbers = #tpu.dot_dimension_numbers<[1], [0], [0], [1], [0, 0, 1, 1], [], []>} : vector<16x16xf32>, vector<16x8xf32>, vector<16x8xf32> -> vector<16x8xf32>
    %115 = vector.broadcast %9 : vector<1x8xf32> to vector<16x8xf32>
    %116 = arith.addf %114, %115 : vector<16x8xf32>
    %117 = arith.addf %108, %116 : vector<16x8xf32>
    %cst_30 = arith.constant 0.000000e+00 : f32
    %118 = vector.broadcast %cst_30 : f32 to vector<16x8xf32>
    %119 = arith.maximumf %117, %118 : vector<16x8xf32>
    %c0_31 = arith.constant 0 : index
    %c0_32 = arith.constant 0 : index
    %120 = vector.load %arg3[%c0_31, %c0_32] : memref<16x8xf32, #tpu.memory_space<vmem>>, vector<16x8xf32>
    tpu.vector_store %arg3[%c0_31, %c0_32], %119 {strides = array<i32>} : memref<16x8xf32, #tpu.memory_space<vmem>>, vector<16x8xf32>,
    return
  }
}

</mosaic_0001>

<llo_original>
// kernel: encoder_block.1
$region0: #{encoder_block.1}
  #allocation0 [shape = 'u32[]', space=smem, size = 0x4, offset = 0x4, fixed_abs, tag = 'smem constant byte address 0x4 - core index']
  #allocation1 [shape = 'u32[144,128]{1,0:T(1,128)}', space=vmem, size = 0x12000, scoped, tag = 'internal scratch']
  %s0 = inlined_call_operand.vmem [shape: f32[16,8], index: 0, kind: input, shape index: {}]
  %s1 = inlined_call_operand.vmem [shape: f32[16,16], index: 1, kind: input, shape index: {}]
  %s2 = inlined_call_operand.vmem [shape: f32[27,136], index: 2, kind: input, shape index: {}]
  %s3 = inlined_call_operand.vmem [shape: f32[16,8], index: 3, kind: output, shape index: {}]
  %s4 = sld [smem:[#allocation0]]
  $region22: #{encoder_block.1} parent=0
    _
  %s6 = ssub.s32 1, %s4
  %s7 = scalar_select 0, %s6, %s4
  // Predicated region
  $region2: #{encoder_block.1} parent=0 // pred_check
    _
  $region3: #{encoder_block.1} parent=0 // pred_check_branch
    %9 = sbr.rel (0) target = $region5
  $region4: #{encoder_block.1} parent=0 // pred_region
    _
  $region5: #{encoder_block.1} parent=0 // pred_fallthru
    _
  // Predicated region
  $region6: #{encoder_block.1} parent=0 // pred_check
    _
  $region7: #{encoder_block.1} parent=0 // pred_check_branch
    %11 = sbr.rel (0) target = $region9
  $region8: #{encoder_block.1} parent=0 // pred_region
    _
  $region9: #{encoder_block.1} parent=0 // pred_fallthru
    _
  // Predicated region
  $region10: #{encoder_block.1} parent=0 // pred_check
    _
  $region11: #{encoder_block.1} parent=0 // pred_check_branch
    %13 = sbr.rel (0) target = $region13
  $region12: #{encoder_block.1} parent=0 // pred_region
    _
  $region13: #{encoder_block.1} parent=0 // pred_fallthru
    _
  %v14 = vld [vmem:[%s0] sm:$0xff]
  %v15 = vld [vmem:[%s0 + $0x8] sm:$0xff]
  %v16 = vld [vmem:[%s1] sm:$0xff]
  %v17 = vld [vmem:[%s1 + $0x8] sm:$0xff]
  %v18 = vld [vmem:[%s2] sm:$0xff]
  %v19 = vld [vmem:[%s2 + $0x8] sm:$0xff]
  %v20 = vld [vmem:[%s2 + $0x10] sm:$0xff]
  %v21 = vld [vmem:[%s2 + $0x20] sm:$0xff]
  %v22 = vld [vmem:[%s2 + $0x30] sm:$0x7]
  %vm23 = vcmask 64512
  %v25 = vsel %vm23, %v14, 0
  %v28 = vsel %vm23, %v15, 0
  %30 = vmatprep.subr.mxu0 0.0
  %31 = vmatpush1.msra.mxu0 0.0
  %32 = vmatprep.subr.mxu0 0.0
  %33 = vmatpush1.msra.mxu0 0.0
  %34 = vmatprep.subr.mxu0 0.0
  %35 = vmatpush1.msra.mxu0 0.0
  %36 = vmatprep.subr.mxu0 0.0
  %37 = vmatpush1.msra.mxu0 0.0
  %38 = vmatprep.subr.mxu0 0.0
  %39 = vmatpush1.msra.mxu0 0.0
  %40 = vmatprep.subr.mxu0 0.0
  %41 = vmatpush1.msra.mxu0 0.0
  %42 = vmatprep.subr.mxu0 0.0
  %43 = vmatpush1.msra.mxu0 0.0
  %44 = vmatprep.subr.mxu0 0.0
  %45 = vmatpush1.msra.mxu0 0.0
  %46 = vmatprep.subr.mxu0 0.0
  %47 = vmatpush1.msra.mxu0 0.0
  %48 = vmatprep.subr.mxu0 0.0
  %49 = vmatpush1.msra.mxu0 0.0
  %50 = vmatprep.subr.mxu0 0.0
  %51 = vmatpush1.msra.mxu0 0.0
  %52 = vmatprep.subr.mxu0 0.0
  %53 = vmatpush1.msra.mxu0 0.0
  %54 = vmatprep.subr.mxu0 0.0
  %55 = vmatpush1.msra.mxu0 0.0
  %56 = vmatprep.subr.mxu0 0.0
  %57 = vmatpush1.msra.mxu0 0.0
  %58 = vmatprep.subr.mxu0 0.0
  %59 = vmatpush1.msra.mxu0 0.0
  %60 = vmatprep.subr.mxu0 0.0
  %61 = vmatpush1.msra.mxu0 %v18
  %62 = vmatprep.subr.mxu0 0.0
  %63 = vmatpush2.msra.mxu0 0.0
  %64 = vmatprep.subr.mxu0 0.0
  %65 = vmatpush2.msra.mxu0 0.0
  %66 = vmatprep.subr.mxu0 0.0
  %67 = vmatpush2.msra.mxu0 0.0
  %68 = vmatprep.subr.mxu0 0.0
  %69 = vmatpush2.msra.mxu0 0.0
  %70 = vmatprep.subr.mxu0 0.0
  %71 = vmatpush2.msra.mxu0 0.0
  %72 = vmatprep.subr.mxu0 0.0
  %73 = vmatpush2.msra.mxu0 0.0
  %74 = vmatprep.subr.mxu0 0.0
  %75 = vmatpush2.msra.mxu0 0.0
  %76 = vmatprep.subr.mxu0 0.0
  %77 = vmatpush2.msra.mxu0 0.0
  %78 = vmatprep.subr.mxu0 0.0
  %79 = vmatpush2.msra.mxu0 0.0
  %80 = vmatprep.subr.mxu0 0.0
  %81 = vmatpush2.msra.mxu0 0.0
  %82 = vmatprep.subr.mxu0 0.0
  %83 = vmatpush2.msra.mxu0 0.0
  %84 = vmatprep.subr.mxu0 0.0
  %85 = vmatpush2.msra.mxu0 0.0
  %86 = vmatprep.subr.mxu0 0.0
  %87 = vmatpush2.msra.mxu0 0.0
  %88 = vmatprep.subr.mxu0 0.0
  %89 = vmatpush2.msra.mxu0 0.0
  %90 = vmatprep.subr.mxu0 0.0
  %91 = vmatpush2.msra.mxu0 0.0
  %92 = vmatprep.subr.mxu0 0.0
  %93 = vmatpush2.msra.mxu0 0.0
  %94 = vmatprep.mubr.f32.mxu0 0.0
  %95 = vmatmul.mubr.f32.gmra.mxu0 %v25
  %v96 = vpop.f32.mrf.mxu0
  %v97 = vadd.f32 0.0, %v96
  %v98 = vpop.f32.mrf.mxu0
  %99 = vmatprep.mubr.f32.mxu0 0.0
  %100 = vmatmul.mubr.f32.gmra.mxu0 %v28
  %v101 = vpop.f32.mrf.mxu0
  %v102 = vadd.f32 0.0, %v101
  %v103 = vpop.f32.mrf.mxu0
  %104 = vdwg.mxu0
  %106 = vrot.lane.b32.xlu0 %v18, 32
  %v107 = vpop.permute.xlu0 %106
  %109 = vxpose.xlu0.b32.start [1/16] %v107, 128
  %110 = vxpose.xlu0.b32.cont [2/16] 0.0, 128
  %111 = vxpose.xlu0.b32.cont [3/16] 0.0, 128
  %112 = vxpose.xlu0.b32.cont [4/16] 0.0, 128
  %113 = vxpose.xlu0.b32.cont [5/16] 0.0, 128
  %114 = vxpose.xlu0.b32.cont [6/16] 0.0, 128
  %115 = vxpose.xlu0.b32.cont [7/16] 0.0, 128
  %116 = vxpose.xlu0.b32.cont [8/16] 0.0, 128
  %117 = vxpose.xlu0.b32.cont [9/16] 0.0, 128
  %118 = vxpose.xlu0.b32.cont [10/16] 0.0, 128
  %119 = vxpose.xlu0.b32.cont [11/16] 0.0, 128
  %120 = vxpose.xlu0.b32.cont [12/16] 0.0, 128
  %121 = vxpose.xlu0.b32.cont [13/16] 0.0, 128
  %122 = vxpose.xlu0.b32.cont [14/16] 0.0, 128
  %123 = vxpose.xlu0.b32.cont [15/16] 0.0, 128
  %124 = vxpose.xlu0.b32.end [16/16] 0.0, 128
  %v125 = vpop.trf.xlu0
  %v126 = vpop.trf.xlu0
  %v127 = vpop.trf.xlu0
  %v128 = vpop.trf.xlu0
  %v129 = vpop.trf.xlu0
  %v130 = vpop.trf.xlu0
  %v131 = vpop.trf.xlu0
  %v132 = vpop.trf.xlu0
  %v133 = vpop.trf.xlu0
  %v134 = vpop.trf.xlu0
  %v135 = vpop.trf.xlu0
  %v136 = vpop.trf.xlu0
  %v137 = vpop.trf.xlu0
  %v138 = vpop.trf.xlu0
  %v139 = vpop.trf.xlu0
  %v140 = vpop.trf.xlu0
  %v142 = vsel %vm23, %v125, 0
  %v145 = vsel %vm23, %v126, 0
  %v148 = vsel %vm23, %v127, 0
  %150 = vmatprep.subr.mxu0 0.0
  %151 = vmatpush1.xpose.msra.mxu0 0.0
  %152 = vmatprep.subr.mxu0 0.0
  %153 = vmatpush1.xpose.msra.mxu0 0.0
  %154 = vmatprep.subr.mxu0 0.0
  %155 = vmatpush1.xpose.msra.mxu0 0.0
  %156 = vmatprep.subr.mxu0 0.0
  %157 = vmatpush1.xpose.msra.mxu0 0.0
  %158 = vmatprep.subr.mxu0 0.0
  %159 = vmatpush1.xpose.msra.mxu0 0.0
  %160 = vmatprep.subr.mxu0 0.0
  %161 = vmatpush1.xpose.msra.mxu0 0.0
  %162 = vmatprep.subr.mxu0 0.0
  %163 = vmatpush1.xpose.msra.mxu0 0.0
  %164 = vmatprep.subr.mxu0 0.0
  %165 = vmatpush1.xpose.msra.mxu0 0.0
  %166 = vmatprep.subr.mxu0 0.0
  %167 = vmatpush1.xpose.msra.mxu0 0.0
  %168 = vmatprep.subr.mxu0 0.0
  %169 = vmatpush1.xpose.msra.mxu0 0.0
  %170 = vmatprep.subr.mxu0 0.0
  %171 = vmatpush1.xpose.msra.mxu0 0.0
  %172 = vmatprep.subr.mxu0 0.0
  %173 = vmatpush1.xpose.msra.mxu0 0.0
  %174 = vmatprep.subr.mxu0 0.0
  %175 = vmatpush1.xpose.msra.mxu0 0.0
  %176 = vmatprep.subr.mxu0 0.0
  %177 = vmatpush1.xpose.msra.mxu0 0.0
  %178 = vmatprep.subr.mxu0 0.0
  %179 = vmatpush1.xpose.msra.mxu0 %v28
  %180 = vmatprep.subr.mxu0 0.0
  %181 = vmatpush1.xpose.msra.mxu0 %v25
  %182 = vmatprep.subr.mxu0 0.0
  %183 = vmatpush2.xpose.msra.mxu0 0.0
  %184 = vmatprep.subr.mxu0 0.0
  %185 = vmatpush2.xpose.msra.mxu0 0.0
  %186 = vmatprep.subr.mxu0 0.0
  %187 = vmatpush2.xpose.msra.mxu0 0.0
  %188 = vmatprep.subr.mxu0 0.0
  %189 = vmatpush2.xpose.msra.mxu0 0.0
  %190 = vmatprep.subr.mxu0 0.0
  %191 = vmatpush2.xpose.msra.mxu0 0.0
  %192 = vmatprep.subr.mxu0 0.0
  %193 = vmatpush2.xpose.msra.mxu0 0.0
  %194 = vmatprep.subr.mxu0 0.0
  %195 = vmatpush2.xpose.msra.mxu0 0.0
  %196 = vmatprep.subr.mxu0 0.0
  %197 = vmatpush2.xpose.msra.mxu0 0.0
  %198 = vmatprep.subr.mxu0 0.0
  %199 = vmatpush2.xpose.msra.mxu0 0.0
  %200 = vmatprep.subr.mxu0 0.0
  %201 = vmatpush2.xpose.msra.mxu0 0.0
  %202 = vmatprep.subr.mxu0 0.0
  %203 = vmatpush2.xpose.msra.mxu0 0.0
  %204 = vmatprep.subr.mxu0 0.0
  %205 = vmatpush2.xpose.msra.mxu0 0.0
  %206 = vmatprep.subr.mxu0 0.0
  %207 = vmatpush2.xpose.msra.mxu0 0.0
  %208 = vmatprep.subr.mxu0 0.0
  %209 = vmatpush2.xpose.msra.mxu0 0.0
  %210 = vmatprep.subr.mxu0 0.0
  %211 = vmatpush2.xpose.msra.mxu0 0.0
  %212 = vmatprep.subr.mxu0 0.0
  %213 = vmatpush2.xpose.msra.mxu0 0.0
  %214 = vmatprep.mubr.f32.mxu0 0.0
  %215 = vmatmul.mubr.f32.gmra.mxu0 %v142
  %v216 = vpop.f32.mrf.mxu0
  %v217 = vadd.f32 0.0, %v216
  %v218 = vpop.f32.mrf.mxu0
  %219 = vmatprep.mubr.f32.mxu0 0.0
  %220 = vmatmul.mubr.f32.gmra.mxu0 %v145
  %v221 = vpop.f32.mrf.mxu0
  %v222 = vadd.f32 0.0, %v221
  %v223 = vpop.f32.mrf.mxu0
  %224 = vmatprep.mubr.f32.mxu0 0.0
  %225 = vmatmul.mubr.f32.gmra.mxu0 %v148
  %v226 = vpop.f32.mrf.mxu0
  %v227 = vadd.f32 0.0, %v226
  %v228 = vpop.f32.mrf.mxu0
  %229 = vdwg.mxu0
  %v230 = vlaneseq
  %v231 = vshrl.u32 %v230, 7
  %v232 = vsub.s32 4, %v231
  %v233 = vrot.slane %v222, %v232
  %235 = vbcast.lane.b32.xlu0 %v233, 256
  %v236 = vpop.permute.xlu0 %235
  %s238 = sor.u32 256, 8
  %239 = vbcast.lane.b32.xlu0 %v233, %s238
  %v240 = vpop.permute.xlu0 %239
  %v241 = vlaneseq
  %v242 = vshrl.u32 %v241, 7
  %v243 = vsub.s32 5, %v242
  %v244 = vrot.slane %v222, %v243
  %246 = vbcast.lane.b32.xlu0 %v244, 256
  %v247 = vpop.permute.xlu0 %246
  %s249 = sor.u32 256, 8
  %250 = vbcast.lane.b32.xlu0 %v244, %s249
  %v251 = vpop.permute.xlu0 %250
  %v252 = vlaneseq
  %v253 = vshrl.u32 %v252, 7
  %v254 = vsub.s32 6, %v253
  %v255 = vrot.slane %v222, %v254
  %257 = vbcast.lane.b32.xlu0 %v255, 256
  %v258 = vpop.permute.xlu0 %257
  %s260 = sor.u32 256, 8
  %261 = vbcast.lane.b32.xlu0 %v255, %s260
  %v262 = vpop.permute.xlu0 %261
  %v263 = vlaneseq
  %v264 = vshrl.u32 %v263, 7
  %v265 = vsub.s32 7, %v264
  %v266 = vrot.slane %v222, %v265
  %268 = vbcast.lane.b32.xlu0 %v266, 256
  %v269 = vpop.permute.xlu0 %268
  %s271 = sor.u32 256, 8
  %272 = vbcast.lane.b32.xlu0 %v266, %s271
  %v273 = vpop.permute.xlu0 %272
  %v274 = vlaneseq
  %v275 = vshrl.u32 %v274, 7
  %v276 = vsub.s32 0, %v275
  %v277 = vrot.slane %v227, %v276
  %279 = vbcast.lane.b32.xlu0 %v277, 256
  %v280 = vpop.permute.xlu0 %279
  %s282 = sor.u32 256, 8
  %283 = vbcast.lane.b32.xlu0 %v277, %s282
  %v284 = vpop.permute.xlu0 %283
  %v285 = vlaneseq
  %v286 = vshrl.u32 %v285, 7
  %v287 = vsub.s32 1, %v286
  %v288 = vrot.slane %v227, %v287
  %290 = vbcast.lane.b32.xlu0 %v288, 256
  %v291 = vpop.permute.xlu0 %290
  %s293 = sor.u32 256, 8
  %294 = vbcast.lane.b32.xlu0 %v288, %s293
  %v295 = vpop.permute.xlu0 %294
  %v296 = vlaneseq
  %v297 = vshrl.u32 %v296, 7
  %v298 = vsub.s32 2, %v297
  %v299 = vrot.slane %v227, %v298
  %301 = vbcast.lane.b32.xlu0 %v299, 256
  %v302 = vpop.permute.xlu0 %301
  %s304 = sor.u32 256, 8
  %305 = vbcast.lane.b32.xlu0 %v299, %s304
  %v306 = vpop.permute.xlu0 %305
  %v307 = vlaneseq
  %v308 = vshrl.u32 %v307, 7
  %v309 = vsub.s32 3, %v308
  %v310 = vrot.slane %v227, %v309
  %312 = vbcast.lane.b32.xlu0 %v310, 256
  %v313 = vpop.permute.xlu0 %312
  %s315 = sor.u32 256, 8
  %316 = vbcast.lane.b32.xlu0 %v310, %s315
  %v317 = vpop.permute.xlu0 %316
  %v318 = vlaneseq
  %v319 = vshrl.u32 %v318, 7
  %v320 = vsub.s32 4, %v319
  %v321 = vrot.slane %v227, %v320
  %323 = vbcast.lane.b32.xlu0 %v321, 256
  %v324 = vpop.permute.xlu0 %323
  %s326 = sor.u32 256, 8
  %327 = vbcast.lane.b32.xlu0 %v321, %s326
  %v328 = vpop.permute.xlu0 %327
  %v329 = vlaneseq
  %v330 = vshrl.u32 %v329, 7
  %v331 = vsub.s32 5, %v330
  %v332 = vrot.slane %v227, %v331
  %334 = vbcast.lane.b32.xlu0 %v332, 256
  %v335 = vpop.permute.xlu0 %334
  %s337 = sor.u32 256, 8
  %338 = vbcast.lane.b32.xlu0 %v332, %s337
  %v339 = vpop.permute.xlu0 %338
  %v340 = vlaneseq
  %v341 = vshrl.u32 %v340, 7
  %v342 = vsub.s32 6, %v341
  %v343 = vrot.slane %v227, %v342
  %345 = vbcast.lane.b32.xlu0 %v343, 256
  %v346 = vpop.permute.xlu0 %345
  %s348 = sor.u32 256, 8
  %349 = vbcast.lane.b32.xlu0 %v343, %s348
  %v350 = vpop.permute.xlu0 %349
  %v351 = vlaneseq
  %v352 = vshrl.u32 %v351, 7
  %v353 = vsub.s32 7, %v352
  %v354 = vrot.slane %v227, %v353
  %356 = vbcast.lane.b32.xlu0 %v354, 256
  %v357 = vpop.permute.xlu0 %356
  %s359 = sor.u32 256, 8
  %360 = vbcast.lane.b32.xlu0 %v354, %s359
  %v361 = vpop.permute.xlu0 %360
  %v364 = vcombine.high %v217, %v217
  %v366 = vunpack.c.l.s4 1966171168
  %v367 = vunpack.c.0.s8 %v366
  %v368 = vlaneseq
  %v369 = vshrl.u32 %v368, 7
  %v370 = vsub.s32 %v367, %v369
  %v371 = vrot.slane %v217, %v370
  %v373 = vunpack.c.l.s4 1966171168
  %v374 = vunpack.c.0.s8 %v373
  %v375 = vlaneseq
  %v376 = vshrl.u32 %v375, 7
  %v377 = vsub.s32 %v374, %v376
  %v378 = vrot.slane %v364, %v377
  %v379 = vcombine.high %v371, %v371
  %v380 = vcombine.high %v378, %v378
  %v382 = vunpack.c.l.s4 1966171168
  %v383 = vunpack.c.0.s8 %v382
  %v384 = vlaneseq
  %v385 = vshrl.u32 %v384, 7
  %v386 = vsub.s32 %v383, %v385
  %v387 = vrot.slane %v371, %v386
  %v389 = vunpack.c.l.s4 1966171168
  %v390 = vunpack.c.0.s8 %v389
  %v391 = vlaneseq
  %v392 = vshrl.u32 %v391, 7
  %v393 = vsub.s32 %v390, %v392
  %v394 = vrot.slane %v378, %v393
  %v396 = vunpack.c.l.s4 1966171168
  %v397 = vunpack.c.0.s8 %v396
  %v398 = vlaneseq
  %v399 = vshrl.u32 %v398, 7
  %v400 = vsub.s32 %v397, %v399
  %v401 = vrot.slane %v379, %v400
  %v403 = vunpack.c.l.s4 1966171168
  %v404 = vunpack.c.0.s8 %v403
  %v405 = vlaneseq
  %v406 = vshrl.u32 %v405, 7
  %v407 = vsub.s32 %v404, %v406
  %v408 = vrot.slane %v380, %v407
  %v409 = vcombine.high %v387, %v387
  %v410 = vcombine.high %v394, %v394
  %v411 = vcombine.high %v401, %v401
  %v412 = vcombine.high %v408, %v408
  %v414 = vunpack.c.l.s4 1966171168
  %v415 = vunpack.c.0.s8 %v414
  %v416 = vlaneseq
  %v417 = vshrl.u32 %v416, 7
  %v418 = vsub.s32 %v415, %v417
  %v419 = vrot.slane %v222, %v418
  %v420 = vcombine.high %v419, %v419
  %v422 = vunpack.c.l.s4 1966171168
  %v423 = vunpack.c.0.s8 %v422
  %v424 = vlaneseq
  %v425 = vshrl.u32 %v424, 7
  %v426 = vsub.s32 %v423, %v425
  %v427 = vrot.slane %v419, %v426
  %v429 = vunpack.c.l.s4 1966171168
  %v430 = vunpack.c.0.s8 %v429
  %v431 = vlaneseq
  %v432 = vshrl.u32 %v431, 7
  %v433 = vsub.s32 %v430, %v432
  %v434 = vrot.slane %v420, %v433
  %v435 = vcombine.high %v427, %v427
  %v436 = vcombine.high %v434, %v434
  %v437 = vlaneseq
  %v438 = vshrl.u32 %v437, 7
  %v439 = vsub.s32 0, %v438
  %v440 = vrot.slane %v387, %v439
  %v441 = vlaneseq
  %v442 = vshrl.u32 %v441, 7
  %v443 = vsub.s32 0, %v442
  %v444 = vrot.slane %v401, %v443
  %v445 = vlaneseq
  %v446 = vshrl.u32 %v445, 7
  %v447 = vsub.s32 0, %v446
  %v448 = vrot.slane %v409, %v447
  %v449 = vlaneseq
  %v450 = vshrl.u32 %v449, 7
  %v451 = vsub.s32 0, %v450
  %v452 = vrot.slane %v411, %v451
  %v453 = vlaneseq
  %v454 = vshrl.u32 %v453, 7
  %v455 = vsub.s32 0, %v454
  %v456 = vrot.slane %v394, %v455
  %v457 = vlaneseq
  %v458 = vshrl.u32 %v457, 7
  %v459 = vsub.s32 0, %v458
  %v460 = vrot.slane %v408, %v459
  %v461 = vlaneseq
  %v462 = vshrl.u32 %v461, 7
  %v463 = vsub.s32 0, %v462
  %v464 = vrot.slane %v410, %v463
  %v465 = vlaneseq
  %v466 = vshrl.u32 %v465, 7
  %v467 = vsub.s32 0, %v466
  %v468 = vrot.slane %v412, %v467
  %v469 = vlaneseq
  %v470 = vshrl.u32 %v469, 7
  %v471 = vsub.s32 0, %v470
  %v472 = vrot.slane %v427, %v471
  %v473 = vlaneseq
  %v474 = vshrl.u32 %v473, 7
  %v475 = vsub.s32 0, %v474
  %v476 = vrot.slane %v434, %v475
  %v477 = vlaneseq
  %v478 = vshrl.u32 %v477, 7
  %v479 = vsub.s32 0, %v478
  %v480 = vrot.slane %v435, %v479
  %v481 = vlaneseq
  %v482 = vshrl.u32 %v481, 7
  %v483 = vsub.s32 0, %v482
  %v484 = vrot.slane %v436, %v483
  %v497 = vadd.f32 %v236, %v440
  %v498 = vadd.f32 %v240, %v440
  %v499 = vadd.f32 %v247, %v444
  %v500 = vadd.f32 %v251, %v444
  %v501 = vadd.f32 %v258, %v448
  %v502 = vadd.f32 %v262, %v448
  %v503 = vadd.f32 %v269, %v452
  %v504 = vadd.f32 %v273, %v452
  %v505 = vadd.f32 %v280, %v456
  %v506 = vadd.f32 %v284, %v456
  %v507 = vadd.f32 %v291, %v460
  %v508 = vadd.f32 %v295, %v460
  %v509 = vadd.f32 %v302, %v464
  %v510 = vadd.f32 %v306, %v464
  %v511 = vadd.f32 %v313, %v468
  %v512 = vadd.f32 %v317, %v468
  %v513 = vadd.f32 %v324, %v472
  %v514 = vadd.f32 %v328, %v472
  %v515 = vadd.f32 %v335, %v476
  %v516 = vadd.f32 %v339, %v476
  %v517 = vadd.f32 %v346, %v480
  %v518 = vadd.f32 %v350, %v480
  %v519 = vadd.f32 %v357, %v484
  %v520 = vadd.f32 %v361, %v484
  %vm521 = vcmp.gt.f32.partialorder %v497, 0.0
  %vm522 = vcmp.gt.f32.partialorder %v498, 0.0
  %vm523 = vcmp.gt.f32.partialorder %v499, 0.0
  %vm524 = vcmp.gt.f32.partialorder %v500, 0.0
  %vm525 = vcmp.gt.f32.partialorder %v501, 0.0
  %vm526 = vcmp.gt.f32.partialorder %v502, 0.0
  %vm527 = vcmp.gt.f32.partialorder %v503, 0.0
  %vm528 = vcmp.gt.f32.partialorder %v504, 0.0
  %vm529 = vcmp.gt.f32.partialorder %v505, 0.0
  %vm530 = vcmp.gt.f32.partialorder %v506, 0.0
  %vm531 = vcmp.gt.f32.partialorder %v507, 0.0
  %vm532 = vcmp.gt.f32.partialorder %v508, 0.0
  %vm533 = vcmp.gt.f32.partialorder %v509, 0.0
  %vm534 = vcmp.gt.f32.partialorder %v510, 0.0
  %vm535 = vcmp.gt.f32.partialorder %v511, 0.0
  %vm536 = vcmp.gt.f32.partialorder %v512, 0.0
  %vm537 = vcmp.gt.f32.partialorder %v513, 0.0
  %vm538 = vcmp.gt.f32.partialorder %v514, 0.0
  %vm539 = vcmp.gt.f32.partialorder %v515, 0.0
  %vm540 = vcmp.gt.f32.partialorder %v516, 0.0
  %vm541 = vcmp.gt.f32.partialorder %v517, 0.0
  %vm542 = vcmp.gt.f32.partialorder %v518, 0.0
  %vm543 = vcmp.gt.f32.partialorder %v519, 0.0
  %vm544 = vcmp.gt.f32.partialorder %v520, 0.0
  %v545 = vmul.f32 %v497, 0.2
  %v546 = vmul.f32 %v498, 0.2
  %v547 = vmul.f32 %v499, 0.2
  %v548 = vmul.f32 %v500, 0.2
  %v549 = vmul.f32 %v501, 0.2
  %v550 = vmul.f32 %v502, 0.2
  %v551 = vmul.f32 %v503, 0.2
  %v552 = vmul.f32 %v504, 0.2
  %v553 = vmul.f32 %v505, 0.2
  %v554 = vmul.f32 %v506, 0.2
  %v555 = vmul.f32 %v507, 0.2
  %v556 = vmul.f32 %v508, 0.2
  %v557 = vmul.f32 %v509, 0.2
  %v558 = vmul.f32 %v510, 0.2
  %v559 = vmul.f32 %v511, 0.2
  %v560 = vmul.f32 %v512, 0.2
  %v561 = vmul.f32 %v513, 0.2
  %v562 = vmul.f32 %v514, 0.2
  %v563 = vmul.f32 %v515, 0.2
  %v564 = vmul.f32 %v516, 0.2
  %v565 = vmul.f32 %v517, 0.2
  %v566 = vmul.f32 %v518, 0.2
  %v567 = vmul.f32 %v519, 0.2
  %v568 = vmul.f32 %v520, 0.2
  %v569 = vsel %vm521, %v497, %v545
  %v570 = vsel %vm522, %v498, %v546
  %v571 = vsel %vm523, %v499, %v547
  %v572 = vsel %vm524, %v500, %v548
  %v573 = vsel %vm525, %v501, %v549
  %v574 = vsel %vm526, %v502, %v550
  %v575 = vsel %vm527, %v503, %v551
  %v576 = vsel %vm528, %v504, %v552
  %v577 = vsel %vm529, %v505, %v553
  %v578 = vsel %vm530, %v506, %v554
  %v579 = vsel %vm531, %v507, %v555
  %v580 = vsel %vm532, %v508, %v556
  %v581 = vsel %vm533, %v509, %v557
  %v582 = vsel %vm534, %v510, %v558
  %v583 = vsel %vm535, %v511, %v559
  %v584 = vsel %vm536, %v512, %v560
  %v585 = vsel %vm537, %v513, %v561
  %v586 = vsel %vm538, %v514, %v562
  %v587 = vsel %vm539, %v515, %v563
  %v588 = vsel %vm540, %v516, %v564
  %v589 = vsel %vm541, %v517, %v565
  %v590 = vsel %vm542, %v518, %v566
  %v591 = vsel %vm543, %v519, %v567
  %v592 = vsel %vm544, %v520, %v568
  %vm593 = vcmp.gt.f32.partialorder %v16, 0.0
  %vm594 = vcmp.gt.f32.partialorder %v17, 0.0
  %v595 = vsel %vm593, 1, 0
  %v596 = vsel %vm594, 1, 0
  %vm597 = vcmp.eq.s32.totalorder %v595, 1
  %vm598 = vcmp.eq.s32.totalorder %v596, 1
  %v599 = vsel %vm597, %v569, -1e+30
  %v600 = vsel %vm598, %v570, -1e+30
  %v601 = vsel %vm597, %v571, -1e+30
  %v602 = vsel %vm598, %v572, -1e+30
  %v603 = vsel %vm597, %v573, -1e+30
  %v604 = vsel %vm598, %v574, -1e+30
  %v605 = vsel %vm597, %v575, -1e+30
  %v606 = vsel %vm598, %v576, -1e+30
  %v607 = vsel %vm597, %v577, -1e+30
  %v608 = vsel %vm598, %v578, -1e+30
  %v609 = vsel %vm597, %v579, -1e+30
  %v610 = vsel %vm598, %v580, -1e+30
  %v611 = vsel %vm597, %v581, -1e+30
  %v612 = vsel %vm598, %v582, -1e+30
  %v613 = vsel %vm597, %v583, -1e+30
  %v614 = vsel %vm598, %v584, -1e+30
  %v615 = vsel %vm597, %v585, -1e+30
  %v616 = vsel %vm598, %v586, -1e+30
  %v617 = vsel %vm597, %v587, -1e+30
  %v618 = vsel %vm598, %v588, -1e+30
  %v619 = vsel %vm597, %v589, -1e+30
  %v620 = vsel %vm598, %v590, -1e+30
  %v621 = vsel %vm597, %v591, -1e+30
  %v622 = vsel %vm598, %v592, -1e+30
  %vm623 = vcmask 130048
  %v624 = vsel %vm623, %v599, -inf
  %625 = vmax.xlane.f32.xlu0 %v624
  %v626 = vpop.xlane.xlu0 %625
  %v627 = vsel %vm623, %v600, -inf
  %628 = vmax.xlane.f32.xlu0 %v627
  %v629 = vpop.xlane.xlu0 %628
  %v630 = vsel %vm623, %v601, -inf
  %631 = vmax.xlane.f32.xlu0 %v630
  %v632 = vpop.xlane.xlu0 %631
  %v633 = vsel %vm623, %v602, -inf
  %634 = vmax.xlane.f32.xlu0 %v633
  %v635 = vpop.xlane.xlu0 %634
  %v636 = vsel %vm623, %v603, -inf
  %637 = vmax.xlane.f32.xlu0 %v636
  %v638 = vpop.xlane.xlu0 %637
  %v639 = vsel %vm623, %v604, -inf
  %640 = vmax.xlane.f32.xlu0 %v639
  %v641 = vpop.xlane.xlu0 %640
  %v642 = vsel %vm623, %v605, -inf
  %643 = vmax.xlane.f32.xlu0 %v642
  %v644 = vpop.xlane.xlu0 %643
  %v645 = vsel %vm623, %v606, -inf
  %646 = vmax.xlane.f32.xlu0 %v645
  %v647 = vpop.xlane.xlu0 %646
  %v648 = vsel %vm623, %v607, -inf
  %649 = vmax.xlane.f32.xlu0 %v648
  %v650 = vpop.xlane.xlu0 %649
  %v651 = vsel %vm623, %v608, -inf
  %652 = vmax.xlane.f32.xlu0 %v651
  %v653 = vpop.xlane.xlu0 %652
  %v654 = vsel %vm623, %v609, -inf
  %655 = vmax.xlane.f32.xlu0 %v654
  %v656 = vpop.xlane.xlu0 %655
  %v657 = vsel %vm623, %v610, -inf
  %658 = vmax.xlane.f32.xlu0 %v657
  %v659 = vpop.xlane.xlu0 %658
  %v660 = vsel %vm623, %v611, -inf
  %661 = vmax.xlane.f32.xlu0 %v660
  %v662 = vpop.xlane.xlu0 %661
  %v663 = vsel %vm623, %v612, -inf
  %664 = vmax.xlane.f32.xlu0 %v663
  %v665 = vpop.xlane.xlu0 %664
  %v666 = vsel %vm623, %v613, -inf
  %667 = vmax.xlane.f32.xlu0 %v666
  %v668 = vpop.xlane.xlu0 %667
  %v669 = vsel %vm623, %v614, -inf
  %670 = vmax.xlane.f32.xlu0 %v669
  %v671 = vpop.xlane.xlu0 %670
  %v672 = vsel %vm623, %v615, -inf
  %673 = vmax.xlane.f32.xlu0 %v672
  %v674 = vpop.xlane.xlu0 %673
  %v675 = vsel %vm623, %v616, -inf
  %676 = vmax.xlane.f32.xlu0 %v675
  %v677 = vpop.xlane.xlu0 %676
  %v678 = vsel %vm623, %v617, -inf
  %679 = vmax.xlane.f32.xlu0 %v678
  %v680 = vpop.xlane.xlu0 %679
  %v681 = vsel %vm623, %v618, -inf
  %682 = vmax.xlane.f32.xlu0 %v681
  %v683 = vpop.xlane.xlu0 %682
  %v684 = vsel %vm623, %v619, -inf
  %685 = vmax.xlane.f32.xlu0 %v684
  %v686 = vpop.xlane.xlu0 %685
  %v687 = vsel %vm623, %v620, -inf
  %688 = vmax.xlane.f32.xlu0 %v687
  %v689 = vpop.xlane.xlu0 %688
  %v690 = vsel %vm623, %v621, -inf
  %691 = vmax.xlane.f32.xlu0 %v690
  %v692 = vpop.xlane.xlu0 %691
  %v693 = vsel %vm623, %v622, -inf
  %694 = vmax.xlane.f32.xlu0 %v693
  %v695 = vpop.xlane.xlu0 %694
  %v696 = vsub.f32 %v599, %v626
  %v697 = vsub.f32 %v600, %v629
  %v698 = vsub.f32 %v601, %v632
  %v699 = vsub.f32 %v602, %v635
  %v700 = vsub.f32 %v603, %v638
  %v701 = vsub.f32 %v604, %v641
  %v702 = vsub.f32 %v605, %v644
  %v703 = vsub.f32 %v606, %v647
  %v704 = vsub.f32 %v607, %v650
  %v705 = vsub.f32 %v608, %v653
  %v706 = vsub.f32 %v609, %v656
  %v707 = vsub.f32 %v610, %v659
  %v708 = vsub.f32 %v611, %v662
  %v709 = vsub.f32 %v612, %v665
  %v710 = vsub.f32 %v613, %v668
  %v711 = vsub.f32 %v614, %v671
  %v712 = vsub.f32 %v615, %v674
  %v713 = vsub.f32 %v616, %v677
  %v714 = vsub.f32 %v617, %v680
  %v715 = vsub.f32 %v618, %v683
  %v716 = vsub.f32 %v619, %v686
  %v717 = vsub.f32 %v620, %v689
  %v718 = vsub.f32 %v621, %v692
  %v719 = vsub.f32 %v622, %v695
  %v720 = vmul.f32 %v696, 1.442695
  %v721 = vpow.pop %v720
  %v722 = vmul.f32 %v697, 1.442695
  %v723 = vpow.pop %v722
  %v724 = vmul.f32 %v698, 1.442695
  %v725 = vpow.pop %v724
  %v726 = vmul.f32 %v699, 1.442695
  %v727 = vpow.pop %v726
  %v728 = vmul.f32 %v700, 1.442695
  %v729 = vpow.pop %v728
  %v730 = vmul.f32 %v701, 1.442695
  %v731 = vpow.pop %v730
  %v732 = vmul.f32 %v702, 1.442695
  %v733 = vpow.pop %v732
  %v734 = vmul.f32 %v703, 1.442695
  %v735 = vpow.pop %v734
  %v736 = vmul.f32 %v704, 1.442695
  %v737 = vpow.pop %v736
  %v738 = vmul.f32 %v705, 1.442695
  %v739 = vpow.pop %v738
  %v740 = vmul.f32 %v706, 1.442695
  %v741 = vpow.pop %v740
  %v742 = vmul.f32 %v707, 1.442695
  %v743 = vpow.pop %v742
  %v744 = vmul.f32 %v708, 1.442695
  %v745 = vpow.pop %v744
  %v746 = vmul.f32 %v709, 1.442695
  %v747 = vpow.pop %v746
  %v748 = vmul.f32 %v710, 1.442695
  %v749 = vpow.pop %v748
  %v750 = vmul.f32 %v711, 1.442695
  %v751 = vpow.pop %v750
  %v752 = vmul.f32 %v712, 1.442695
  %v753 = vpow.pop %v752
  %v754 = vmul.f32 %v713, 1.442695
  %v755 = vpow.pop %v754
  %v756 = vmul.f32 %v714, 1.442695
  %v757 = vpow.pop %v756
  %v758 = vmul.f32 %v715, 1.442695
  %v759 = vpow.pop %v758
  %v760 = vmul.f32 %v716, 1.442695
  %v761 = vpow.pop %v760
  %v762 = vmul.f32 %v717, 1.442695
  %v763 = vpow.pop %v762
  %v764 = vmul.f32 %v718, 1.442695
  %v765 = vpow.pop %v764
  %v766 = vmul.f32 %v719, 1.442695
  %v767 = vpow.pop %v766
  %v768 = vsel %vm623, %v721, 0.0
  %769 = vadd.xlane.f32.xlu0 %v768
  %v770 = vpop.xlane.xlu0 %769
  %v771 = vsel %vm623, %v723, 0.0
  %772 = vadd.xlane.f32.xlu0 %v771
  %v773 = vpop.xlane.xlu0 %772
  %v774 = vsel %vm623, %v725, 0.0
  %775 = vadd.xlane.f32.xlu0 %v774
  %v776 = vpop.xlane.xlu0 %775
  %v777 = vsel %vm623, %v727, 0.0
  %778 = vadd.xlane.f32.xlu0 %v777
  %v779 = vpop.xlane.xlu0 %778
  %v780 = vsel %vm623, %v729, 0.0
  %781 = vadd.xlane.f32.xlu0 %v780
  %v782 = vpop.xlane.xlu0 %781
  %v783 = vsel %vm623, %v731, 0.0
  %784 = vadd.xlane.f32.xlu0 %v783
  %v785 = vpop.xlane.xlu0 %784
  %v786 = vsel %vm623, %v733, 0.0
  %787 = vadd.xlane.f32.xlu0 %v786
  %v788 = vpop.xlane.xlu0 %787
  %v789 = vsel %vm623, %v735, 0.0
  %790 = vadd.xlane.f32.xlu0 %v789
  %v791 = vpop.xlane.xlu0 %790
  %v792 = vsel %vm623, %v737, 0.0
  %793 = vadd.xlane.f32.xlu0 %v792
  %v794 = vpop.xlane.xlu0 %793
  %v795 = vsel %vm623, %v739, 0.0
  %796 = vadd.xlane.f32.xlu0 %v795
  %v797 = vpop.xlane.xlu0 %796
  %v798 = vsel %vm623, %v741, 0.0
  %799 = vadd.xlane.f32.xlu0 %v798
  %v800 = vpop.xlane.xlu0 %799
  %v801 = vsel %vm623, %v743, 0.0
  %802 = vadd.xlane.f32.xlu0 %v801
  %v803 = vpop.xlane.xlu0 %802
  %v804 = vsel %vm623, %v745, 0.0
  %805 = vadd.xlane.f32.xlu0 %v804
  %v806 = vpop.xlane.xlu0 %805
  %v807 = vsel %vm623, %v747, 0.0
  %808 = vadd.xlane.f32.xlu0 %v807
  %v809 = vpop.xlane.xlu0 %808
  %v810 = vsel %vm623, %v749, 0.0
  %811 = vadd.xlane.f32.xlu0 %v810
  %v812 = vpop.xlane.xlu0 %811
  %v813 = vsel %vm623, %v751, 0.0
  %814 = vadd.xlane.f32.xlu0 %v813
  %v815 = vpop.xlane.xlu0 %814
  %v816 = vsel %vm623, %v753, 0.0
  %817 = vadd.xlane.f32.xlu0 %v816
  %v818 = vpop.xlane.xlu0 %817
  %v819 = vsel %vm623, %v755, 0.0
  %820 = vadd.xlane.f32.xlu0 %v819
  %v821 = vpop.xlane.xlu0 %820
  %v822 = vsel %vm623, %v757, 0.0
  %823 = vadd.xlane.f32.xlu0 %v822
  %v824 = vpop.xlane.xlu0 %823
  %v825 = vsel %vm623, %v759, 0.0
  %826 = vadd.xlane.f32.xlu0 %v825
  %v827 = vpop.xlane.xlu0 %826
  %v828 = vsel %vm623, %v761, 0.0
  %829 = vadd.xlane.f32.xlu0 %v828
  %v830 = vpop.xlane.xlu0 %829
  %v831 = vsel %vm623, %v763, 0.0
  %832 = vadd.xlane.f32.xlu0 %v831
  %v833 = vpop.xlane.xlu0 %832
  %v834 = vsel %vm623, %v765, 0.0
  %835 = vadd.xlane.f32.xlu0 %v834
  %v836 = vpop.xlane.xlu0 %835
  %v837 = vsel %vm623, %v767, 0.0
  %838 = vadd.xlane.f32.xlu0 %v837
  %v839 = vpop.xlane.xlu0 %838
  %v840 = vrcp.pop %v770
  %v841 = vrcp.pop %v773
  %v842 = vrcp.pop %v776
  %v843 = vrcp.pop %v779
  %v844 = vrcp.pop %v782
  %v845 = vrcp.pop %v785
  %v846 = vrcp.pop %v788
  %v847 = vrcp.pop %v791
  %v848 = vrcp.pop %v794
  %v849 = vrcp.pop %v797
  %v850 = vrcp.pop %v800
  %v851 = vrcp.pop %v803
  %v852 = vrcp.pop %v806
  %v853 = vrcp.pop %v809
  %v854 = vrcp.pop %v812
  %v855 = vrcp.pop %v815
  %v856 = vrcp.pop %v818
  %v857 = vrcp.pop %v821
  %v858 = vrcp.pop %v824
  %v859 = vrcp.pop %v827
  %v860 = vrcp.pop %v830
  %v861 = vrcp.pop %v833
  %v862 = vrcp.pop %v836
  %v863 = vrcp.pop %v839
  %v864 = vmul.f32 %v721, %v840
  %v865 = vmul.f32 %v723, %v841
  %v866 = vmul.f32 %v725, %v842
  %v867 = vmul.f32 %v727, %v843
  %v868 = vmul.f32 %v729, %v844
  %v869 = vmul.f32 %v731, %v845
  %v870 = vmul.f32 %v733, %v846
  %v871 = vmul.f32 %v735, %v847
  %v872 = vmul.f32 %v737, %v848
  %v873 = vmul.f32 %v739, %v849
  %v874 = vmul.f32 %v741, %v850
  %v875 = vmul.f32 %v743, %v851
  %v876 = vmul.f32 %v745, %v852
  %v877 = vmul.f32 %v747, %v853
  %v878 = vmul.f32 %v749, %v854
  %v879 = vmul.f32 %v751, %v855
  %v880 = vmul.f32 %v753, %v856
  %v881 = vmul.f32 %v755, %v857
  %v882 = vmul.f32 %v757, %v858
  %v883 = vmul.f32 %v759, %v859
  %v884 = vmul.f32 %v761, %v860
  %v885 = vmul.f32 %v763, %v861
  %v886 = vmul.f32 %v765, %v862
  %v887 = vmul.f32 %v767, %v863
  %890 = vrot.lane.b32.xlu0 %v97, 120
  %v891 = vpop.permute.xlu0 %890
  %892 = vrot.lane.b32.xlu0 %v102, 120
  %v893 = vpop.permute.xlu0 %892
  %v897 = vsel %vm623, %v866, 0
  %v900 = vsel %vm623, %v867, 0
  %902 = vmatprep.subr.mxu0 0.0
  %903 = vmatpush1.msra.mxu0 0.0
  %904 = vmatprep.subr.mxu0 0.0
  %905 = vmatpush1.msra.mxu0 0.0
  %906 = vmatprep.subr.mxu0 0.0
  %907 = vmatpush1.msra.mxu0 0.0
  %908 = vmatprep.subr.mxu0 0.0
  %909 = vmatpush1.msra.mxu0 0.0
  %910 = vmatprep.subr.mxu0 0.0
  %911 = vmatpush1.msra.mxu0 0.0
  %912 = vmatprep.subr.mxu0 0.0
  %913 = vmatpush1.msra.mxu0 0.0
  %914 = vmatprep.subr.mxu0 0.0
  %915 = vmatpush1.msra.mxu0 0.0
  %916 = vmatprep.subr.mxu0 0.0
  %917 = vmatpush1.msra.mxu0 0.0
  %918 = vmatprep.subr.mxu0 0.0
  %919 = vmatpush1.msra.mxu0 0.0
  %920 = vmatprep.subr.mxu0 0.0
  %921 = vmatpush1.msra.mxu0 0.0
  %922 = vmatprep.subr.mxu0 0.0
  %923 = vmatpush1.msra.mxu0 0.0
  %924 = vmatprep.subr.mxu0 0.0
  %925 = vmatpush1.msra.mxu0 0.0
  %926 = vmatprep.subr.mxu0 0.0
  %927 = vmatpush1.msra.mxu0 0.0
  %928 = vmatprep.subr.mxu0 0.0
  %929 = vmatpush1.msra.mxu0 0.0
  %930 = vmatprep.subr.mxu0 0.0
  %931 = vmatpush1.msra.mxu0 %v893
  %932 = vmatprep.subr.mxu0 0.0
  %933 = vmatpush1.msra.mxu0 %v891
  %934 = vmatprep.subr.mxu0 0.0
  %935 = vmatpush2.msra.mxu0 0.0
  %936 = vmatprep.subr.mxu0 0.0
  %937 = vmatpush2.msra.mxu0 0.0
  %938 = vmatprep.subr.mxu0 0.0
  %939 = vmatpush2.msra.mxu0 0.0
  %940 = vmatprep.subr.mxu0 0.0
  %941 = vmatpush2.msra.mxu0 0.0
  %942 = vmatprep.subr.mxu0 0.0
  %943 = vmatpush2.msra.mxu0 0.0
  %944 = vmatprep.subr.mxu0 0.0
  %945 = vmatpush2.msra.mxu0 0.0
  %946 = vmatprep.subr.mxu0 0.0
  %947 = vmatpush2.msra.mxu0 0.0
  %948 = vmatprep.subr.mxu0 0.0
  %949 = vmatpush2.msra.mxu0 0.0
  %950 = vmatprep.subr.mxu0 0.0
  %951 = vmatpush2.msra.mxu0 0.0
  %952 = vmatprep.subr.mxu0 0.0
  %953 = vmatpush2.msra.mxu0 0.0
  %954 = vmatprep.subr.mxu0 0.0
  %955 = vmatpush2.msra.mxu0 0.0
  %956 = vmatprep.subr.mxu0 0.0
  %957 = vmatpush2.msra.mxu0 0.0
  %958 = vmatprep.subr.mxu0 0.0
  %959 = vmatpush2.msra.mxu0 0.0
  %960 = vmatprep.subr.mxu0 0.0
  %961 = vmatpush2.msra.mxu0 0.0
  %962 = vmatprep.subr.mxu0 0.0
  %963 = vmatpush2.msra.mxu0 0.0
  %964 = vmatprep.subr.mxu0 0.0
  %965 = vmatpush2.msra.mxu0 0.0
  %966 = vmatprep.mubr.f32.mxu0 0.0
  %967 = vmatmul.mubr.f32.gmra.mxu0 %v897
  %v968 = vpop.f32.mrf.mxu0
  %v969 = vadd.f32 0.0, %v968
  %v970 = vpop.f32.mrf.mxu0
  %971 = vmatprep.mubr.f32.mxu0 0.0
  %972 = vmatmul.mubr.f32.gmra.mxu0 %v900
  %v973 = vpop.f32.mrf.mxu0
  %v974 = vadd.f32 0.0, %v973
  %v975 = vpop.f32.mrf.mxu0
  %976 = vdwg.mxu0
  %v978 = vsel %vm623, %v864, 0
  %v981 = vsel %vm623, %v865, 0
  %983 = vmatprep.subr.mxu0 0.0
  %984 = vmatpush1.msra.mxu0 0.0
  %985 = vmatprep.subr.mxu0 0.0
  %986 = vmatpush1.msra.mxu0 0.0
  %987 = vmatprep.subr.mxu0 0.0
  %988 = vmatpush1.msra.mxu0 0.0
  %989 = vmatprep.subr.mxu0 0.0
  %990 = vmatpush1.msra.mxu0 0.0
  %991 = vmatprep.subr.mxu0 0.0
  %992 = vmatpush1.msra.mxu0 0.0
  %993 = vmatprep.subr.mxu0 0.0
  %994 = vmatpush1.msra.mxu0 0.0
  %995 = vmatprep.subr.mxu0 0.0
  %996 = vmatpush1.msra.mxu0 0.0
  %997 = vmatprep.subr.mxu0 0.0
  %998 = vmatpush1.msra.mxu0 0.0
  %999 = vmatprep.subr.mxu0 0.0
  %1000 = vmatpush1.msra.mxu0 0.0
  %1001 = vmatprep.subr.mxu0 0.0
  %1002 = vmatpush1.msra.mxu0 0.0
  %1003 = vmatprep.subr.mxu0 0.0
  %1004 = vmatpush1.msra.mxu0 0.0
  %1005 = vmatprep.subr.mxu0 0.0
  %1006 = vmatpush1.msra.mxu0 0.0
  %1007 = vmatprep.subr.mxu0 0.0
  %1008 = vmatpush1.msra.mxu0 0.0
  %1009 = vmatprep.subr.mxu0 0.0
  %1010 = vmatpush1.msra.mxu0 0.0
  %1011 = vmatprep.subr.mxu0 0.0
  %1012 = vmatpush1.msra.mxu0 %v102
  %1013 = vmatprep.subr.mxu0 0.0
  %1014 = vmatpush1.msra.mxu0 %v97
  %1015 = vmatprep.subr.mxu0 0.0
  %1016 = vmatpush2.msra.mxu0 0.0
  %1017 = vmatprep.subr.mxu0 0.0
  %1018 = vmatpush2.msra.mxu0 0.0
  %1019 = vmatprep.subr.mxu0 0.0
  %1020 = vmatpush2.msra.mxu0 0.0
  %1021 = vmatprep.subr.mxu0 0.0
  %1022 = vmatpush2.msra.mxu0 0.0
  %1023 = vmatprep.subr.mxu0 0.0
  %1024 = vmatpush2.msra.mxu0 0.0
  %1025 = vmatprep.subr.mxu0 0.0
  %1026 = vmatpush2.msra.mxu0 0.0
  %1027 = vmatprep.subr.mxu0 0.0
  %1028 = vmatpush2.msra.mxu0 0.0
  %1029 = vmatprep.subr.mxu0 0.0
  %1030 = vmatpush2.msra.mxu0 0.0
  %1031 = vmatprep.subr.mxu0 0.0
  %1032 = vmatpush2.msra.mxu0 0.0
  %1033 = vmatprep.subr.mxu0 0.0
  %1034 = vmatpush2.msra.mxu0 0.0
  %1035 = vmatprep.subr.mxu0 0.0
  %1036 = vmatpush2.msra.mxu0 0.0
  %1037 = vmatprep.subr.mxu0 0.0
  %1038 = vmatpush2.msra.mxu0 0.0
  %1039 = vmatprep.subr.mxu0 0.0
  %1040 = vmatpush2.msra.mxu0 0.0
  %1041 = vmatprep.subr.mxu0 0.0
  %1042 = vmatpush2.msra.mxu0 0.0
  %1043 = vmatprep.subr.mxu0 0.0
  %1044 = vmatpush2.msra.mxu0 0.0
  %1045 = vmatprep.subr.mxu0 0.0
  %1046 = vmatpush2.msra.mxu0 0.0
  %1047 = vmatprep.mubr.f32.mxu0 0.0
  %1048 = vmatmul.mubr.f32.gmra.mxu0 %v978
  %v1049 = vpop.f32.mrf.mxu0
  %v1050 = vadd.f32 %v969, %v1049
  %v1051 = vpop.f32.mrf.mxu0
  %1052 = vmatprep.mubr.f32.mxu0 0.0
  %1053 = vmatmul.mubr.f32.gmra.mxu0 %v981
  %v1054 = vpop.f32.mrf.mxu0
  %v1055 = vadd.f32 %v974, %v1054
  %v1056 = vpop.f32.mrf.mxu0
  %1057 = vdwg.mxu0
  %1058 = vrot.lane.b32.xlu0 %v97, 112
  %v1059 = vpop.permute.xlu0 %1058
  %1060 = vrot.lane.b32.xlu0 %v102, 112
  %v1061 = vpop.permute.xlu0 %1060
  %v1065 = vsel %vm623, %v868, 0
  %v1068 = vsel %vm623, %v869, 0
  %1070 = vmatprep.subr.mxu0 0.0
  %1071 = vmatpush1.msra.mxu0 0.0
  %1072 = vmatprep.subr.mxu0 0.0
  %1073 = vmatpush1.msra.mxu0 0.0
  %1074 = vmatprep.subr.mxu0 0.0
  %1075 = vmatpush1.msra.mxu0 0.0
  %1076 = vmatprep.subr.mxu0 0.0
  %1077 = vmatpush1.msra.mxu0 0.0
  %1078 = vmatprep.subr.mxu0 0.0
  %1079 = vmatpush1.msra.mxu0 0.0
  %1080 = vmatprep.subr.mxu0 0.0
  %1081 = vmatpush1.msra.mxu0 0.0
  %1082 = vmatprep.subr.mxu0 0.0
  %1083 = vmatpush1.msra.mxu0 0.0
  %1084 = vmatprep.subr.mxu0 0.0
  %1085 = vmatpush1.msra.mxu0 0.0
  %1086 = vmatprep.subr.mxu0 0.0
  %1087 = vmatpush1.msra.mxu0 0.0
  %1088 = vmatprep.subr.mxu0 0.0
  %1089 = vmatpush1.msra.mxu0 0.0
  %1090 = vmatprep.subr.mxu0 0.0
  %1091 = vmatpush1.msra.mxu0 0.0
  %1092 = vmatprep.subr.mxu0 0.0
  %1093 = vmatpush1.msra.mxu0 0.0
  %1094 = vmatprep.subr.mxu0 0.0
  %1095 = vmatpush1.msra.mxu0 0.0
  %1096 = vmatprep.subr.mxu0 0.0
  %1097 = vmatpush1.msra.mxu0 0.0
  %1098 = vmatprep.subr.mxu0 0.0
  %1099 = vmatpush1.msra.mxu0 %v1061
  %1100 = vmatprep.subr.mxu0 0.0
  %1101 = vmatpush1.msra.mxu0 %v1059
  %1102 = vmatprep.subr.mxu0 0.0
  %1103 = vmatpush2.msra.mxu0 0.0
  %1104 = vmatprep.subr.mxu0 0.0
  %1105 = vmatpush2.msra.mxu0 0.0
  %1106 = vmatprep.subr.mxu0 0.0
  %1107 = vmatpush2.msra.mxu0 0.0
  %1108 = vmatprep.subr.mxu0 0.0
  %1109 = vmatpush2.msra.mxu0 0.0
  %1110 = vmatprep.subr.mxu0 0.0
  %1111 = vmatpush2.msra.mxu0 0.0
  %1112 = vmatprep.subr.mxu0 0.0
  %1113 = vmatpush2.msra.mxu0 0.0
  %1114 = vmatprep.subr.mxu0 0.0
  %1115 = vmatpush2.msra.mxu0 0.0
  %1116 = vmatprep.subr.mxu0 0.0
  %1117 = vmatpush2.msra.mxu0 0.0
  %1118 = vmatprep.subr.mxu0 0.0
  %1119 = vmatpush2.msra.mxu0 0.0
  %1120 = vmatprep.subr.mxu0 0.0
  %1121 = vmatpush2.msra.mxu0 0.0
  %1122 = vmatprep.subr.mxu0 0.0
  %1123 = vmatpush2.msra.mxu0 0.0
  %1124 = vmatprep.subr.mxu0 0.0
  %1125 = vmatpush2.msra.mxu0 0.0
  %1126 = vmatprep.subr.mxu0 0.0
  %1127 = vmatpush2.msra.mxu0 0.0
  %1128 = vmatprep.subr.mxu0 0.0
  %1129 = vmatpush2.msra.mxu0 0.0
  %1130 = vmatprep.subr.mxu0 0.0
  %1131 = vmatpush2.msra.mxu0 0.0
  %1132 = vmatprep.subr.mxu0 0.0
  %1133 = vmatpush2.msra.mxu0 0.0
  %1134 = vmatprep.mubr.f32.mxu0 0.0
  %1135 = vmatmul.mubr.f32.gmra.mxu0 %v1065
  %v1136 = vpop.f32.mrf.mxu0
  %v1137 = vadd.f32 0.0, %v1136
  %v1138 = vpop.f32.mrf.mxu0
  %1139 = vmatprep.mubr.f32.mxu0 0.0
  %1140 = vmatmul.mubr.f32.gmra.mxu0 %v1068
  %v1141 = vpop.f32.mrf.mxu0
  %v1142 = vadd.f32 0.0, %v1141
  %v1143 = vpop.f32.mrf.mxu0
  %1144 = vdwg.mxu0
  %v1145 = vadd.f32 %v1050, %v1137
  %v1146 = vadd.f32 %v1055, %v1142
  %1147 = vrot.lane.b32.xlu0 %v97, 104
  %v1148 = vpop.permute.xlu0 %1147
  %1149 = vrot.lane.b32.xlu0 %v102, 104
  %v1150 = vpop.permute.xlu0 %1149
  %v1154 = vsel %vm623, %v870, 0
  %v1157 = vsel %vm623, %v871, 0
  %1159 = vmatprep.subr.mxu0 0.0
  %1160 = vmatpush1.msra.mxu0 0.0
  %1161 = vmatprep.subr.mxu0 0.0
  %1162 = vmatpush1.msra.mxu0 0.0
  %1163 = vmatprep.subr.mxu0 0.0
  %1164 = vmatpush1.msra.mxu0 0.0
  %1165 = vmatprep.subr.mxu0 0.0
  %1166 = vmatpush1.msra.mxu0 0.0
  %1167 = vmatprep.subr.mxu0 0.0
  %1168 = vmatpush1.msra.mxu0 0.0
  %1169 = vmatprep.subr.mxu0 0.0
  %1170 = vmatpush1.msra.mxu0 0.0
  %1171 = vmatprep.subr.mxu0 0.0
  %1172 = vmatpush1.msra.mxu0 0.0
  %1173 = vmatprep.subr.mxu0 0.0
  %1174 = vmatpush1.msra.mxu0 0.0
  %1175 = vmatprep.subr.mxu0 0.0
  %1176 = vmatpush1.msra.mxu0 0.0
  %1177 = vmatprep.subr.mxu0 0.0
  %1178 = vmatpush1.msra.mxu0 0.0
  %1179 = vmatprep.subr.mxu0 0.0
  %1180 = vmatpush1.msra.mxu0 0.0
  %1181 = vmatprep.subr.mxu0 0.0
  %1182 = vmatpush1.msra.mxu0 0.0
  %1183 = vmatprep.subr.mxu0 0.0
  %1184 = vmatpush1.msra.mxu0 0.0
  %1185 = vmatprep.subr.mxu0 0.0
  %1186 = vmatpush1.msra.mxu0 0.0
  %1187 = vmatprep.subr.mxu0 0.0
  %1188 = vmatpush1.msra.mxu0 %v1150
  %1189 = vmatprep.subr.mxu0 0.0
  %1190 = vmatpush1.msra.mxu0 %v1148
  %1191 = vmatprep.subr.mxu0 0.0
  %1192 = vmatpush2.msra.mxu0 0.0
  %1193 = vmatprep.subr.mxu0 0.0
  %1194 = vmatpush2.msra.mxu0 0.0
  %1195 = vmatprep.subr.mxu0 0.0
  %1196 = vmatpush2.msra.mxu0 0.0
  %1197 = vmatprep.subr.mxu0 0.0
  %1198 = vmatpush2.msra.mxu0 0.0
  %1199 = vmatprep.subr.mxu0 0.0
  %1200 = vmatpush2.msra.mxu0 0.0
  %1201 = vmatprep.subr.mxu0 0.0
  %1202 = vmatpush2.msra.mxu0 0.0
  %1203 = vmatprep.subr.mxu0 0.0
  %1204 = vmatpush2.msra.mxu0 0.0
  %1205 = vmatprep.subr.mxu0 0.0
  %1206 = vmatpush2.msra.mxu0 0.0
  %1207 = vmatprep.subr.mxu0 0.0
  %1208 = vmatpush2.msra.mxu0 0.0
  %1209 = vmatprep.subr.mxu0 0.0
  %1210 = vmatpush2.msra.mxu0 0.0
  %1211 = vmatprep.subr.mxu0 0.0
  %1212 = vmatpush2.msra.mxu0 0.0
  %1213 = vmatprep.subr.mxu0 0.0
  %1214 = vmatpush2.msra.mxu0 0.0
  %1215 = vmatprep.subr.mxu0 0.0
  %1216 = vmatpush2.msra.mxu0 0.0
  %1217 = vmatprep.subr.mxu0 0.0
  %1218 = vmatpush2.msra.mxu0 0.0
  %1219 = vmatprep.subr.mxu0 0.0
  %1220 = vmatpush2.msra.mxu0 0.0
  %1221 = vmatprep.subr.mxu0 0.0
  %1222 = vmatpush2.msra.mxu0 0.0
  %1223 = vmatprep.mubr.f32.mxu0 0.0
  %1224 = vmatmul.mubr.f32.gmra.mxu0 %v1154
  %v1225 = vpop.f32.mrf.mxu0
  %v1226 = vadd.f32 0.0, %v1225
  %v1227 = vpop.f32.mrf.mxu0
  %1228 = vmatprep.mubr.f32.mxu0 0.0
  %1229 = vmatmul.mubr.f32.gmra.mxu0 %v1157
  %v1230 = vpop.f32.mrf.mxu0
  %v1231 = vadd.f32 0.0, %v1230
  %v1232 = vpop.f32.mrf.mxu0
  %1233 = vdwg.mxu0
  %v1234 = vadd.f32 %v1145, %v1226
  %v1235 = vadd.f32 %v1146, %v1231
  %1236 = vrot.lane.b32.xlu0 %v97, 96
  %v1237 = vpop.permute.xlu0 %1236
  %1238 = vrot.lane.b32.xlu0 %v102, 96
  %v1239 = vpop.permute.xlu0 %1238
  %v1243 = vsel %vm623, %v872, 0
  %v1246 = vsel %vm623, %v873, 0
  %1248 = vmatprep.subr.mxu0 0.0
  %1249 = vmatpush1.msra.mxu0 0.0
  %1250 = vmatprep.subr.mxu0 0.0
  %1251 = vmatpush1.msra.mxu0 0.0
  %1252 = vmatprep.subr.mxu0 0.0
  %1253 = vmatpush1.msra.mxu0 0.0
  %1254 = vmatprep.subr.mxu0 0.0
  %1255 = vmatpush1.msra.mxu0 0.0
  %1256 = vmatprep.subr.mxu0 0.0
  %1257 = vmatpush1.msra.mxu0 0.0
  %1258 = vmatprep.subr.mxu0 0.0
  %1259 = vmatpush1.msra.mxu0 0.0
  %1260 = vmatprep.subr.mxu0 0.0
  %1261 = vmatpush1.msra.mxu0 0.0
  %1262 = vmatprep.subr.mxu0 0.0
  %1263 = vmatpush1.msra.mxu0 0.0
  %1264 = vmatprep.subr.mxu0 0.0
  %1265 = vmatpush1.msra.mxu0 0.0
  %1266 = vmatprep.subr.mxu0 0.0
  %1267 = vmatpush1.msra.mxu0 0.0
  %1268 = vmatprep.subr.mxu0 0.0
  %1269 = vmatpush1.msra.mxu0 0.0
  %1270 = vmatprep.subr.mxu0 0.0
  %1271 = vmatpush1.msra.mxu0 0.0
  %1272 = vmatprep.subr.mxu0 0.0
  %1273 = vmatpush1.msra.mxu0 0.0
  %1274 = vmatprep.subr.mxu0 0.0
  %1275 = vmatpush1.msra.mxu0 0.0
  %1276 = vmatprep.subr.mxu0 0.0
  %1277 = vmatpush1.msra.mxu0 %v1239
  %1278 = vmatprep.subr.mxu0 0.0
  %1279 = vmatpush1.msra.mxu0 %v1237
  %1280 = vmatprep.subr.mxu0 0.0
  %1281 = vmatpush2.msra.mxu0 0.0
  %1282 = vmatprep.subr.mxu0 0.0
  %1283 = vmatpush2.msra.mxu0 0.0
  %1284 = vmatprep.subr.mxu0 0.0
  %1285 = vmatpush2.msra.mxu0 0.0
  %1286 = vmatprep.subr.mxu0 0.0
  %1287 = vmatpush2.msra.mxu0 0.0
  %1288 = vmatprep.subr.mxu0 0.0
  %1289 = vmatpush2.msra.mxu0 0.0
  %1290 = vmatprep.subr.mxu0 0.0
  %1291 = vmatpush2.msra.mxu0 0.0
  %1292 = vmatprep.subr.mxu0 0.0
  %1293 = vmatpush2.msra.mxu0 0.0
  %1294 = vmatprep.subr.mxu0 0.0
  %1295 = vmatpush2.msra.mxu0 0.0
  %1296 = vmatprep.subr.mxu0 0.0
  %1297 = vmatpush2.msra.mxu0 0.0
  %1298 = vmatprep.subr.mxu0 0.0
  %1299 = vmatpush2.msra.mxu0 0.0
  %1300 = vmatprep.subr.mxu0 0.0
  %1301 = vmatpush2.msra.mxu0 0.0
  %1302 = vmatprep.subr.mxu0 0.0
  %1303 = vmatpush2.msra.mxu0 0.0
  %1304 = vmatprep.subr.mxu0 0.0
  %1305 = vmatpush2.msra.mxu0 0.0
  %1306 = vmatprep.subr.mxu0 0.0
  %1307 = vmatpush2.msra.mxu0 0.0
  %1308 = vmatprep.subr.mxu0 0.0
  %1309 = vmatpush2.msra.mxu0 0.0
  %1310 = vmatprep.subr.mxu0 0.0
  %1311 = vmatpush2.msra.mxu0 0.0
  %1312 = vmatprep.mubr.f32.mxu0 0.0
  %1313 = vmatmul.mubr.f32.gmra.mxu0 %v1243
  %v1314 = vpop.f32.mrf.mxu0
  %v1315 = vadd.f32 0.0, %v1314
  %v1316 = vpop.f32.mrf.mxu0
  %1317 = vmatprep.mubr.f32.mxu0 0.0
  %1318 = vmatmul.mubr.f32.gmra.mxu0 %v1246
  %v1319 = vpop.f32.mrf.mxu0
  %v1320 = vadd.f32 0.0, %v1319
  %v1321 = vpop.f32.mrf.mxu0
  %1322 = vdwg.mxu0
  %v1323 = vadd.f32 %v1234, %v1315
  %v1324 = vadd.f32 %v1235, %v1320
  %1325 = vrot.lane.b32.xlu0 %v97, 88
  %v1326 = vpop.permute.xlu0 %1325
  %1327 = vrot.lane.b32.xlu0 %v102, 88
  %v1328 = vpop.permute.xlu0 %1327
  %v1332 = vsel %vm623, %v874, 0
  %v1335 = vsel %vm623, %v875, 0
  %1337 = vmatprep.subr.mxu0 0.0
  %1338 = vmatpush1.msra.mxu0 0.0
  %1339 = vmatprep.subr.mxu0 0.0
  %1340 = vmatpush1.msra.mxu0 0.0
  %1341 = vmatprep.subr.mxu0 0.0
  %1342 = vmatpush1.msra.mxu0 0.0
  %1343 = vmatprep.subr.mxu0 0.0
  %1344 = vmatpush1.msra.mxu0 0.0
  %1345 = vmatprep.subr.mxu0 0.0
  %1346 = vmatpush1.msra.mxu0 0.0
  %1347 = vmatprep.subr.mxu0 0.0
  %1348 = vmatpush1.msra.mxu0 0.0
  %1349 = vmatprep.subr.mxu0 0.0
  %1350 = vmatpush1.msra.mxu0 0.0
  %1351 = vmatprep.subr.mxu0 0.0
  %1352 = vmatpush1.msra.mxu0 0.0
  %1353 = vmatprep.subr.mxu0 0.0
  %1354 = vmatpush1.msra.mxu0 0.0
  %1355 = vmatprep.subr.mxu0 0.0
  %1356 = vmatpush1.msra.mxu0 0.0
  %1357 = vmatprep.subr.mxu0 0.0
  %1358 = vmatpush1.msra.mxu0 0.0
  %1359 = vmatprep.subr.mxu0 0.0
  %1360 = vmatpush1.msra.mxu0 0.0
  %1361 = vmatprep.subr.mxu0 0.0
  %1362 = vmatpush1.msra.mxu0 0.0
  %1363 = vmatprep.subr.mxu0 0.0
  %1364 = vmatpush1.msra.mxu0 0.0
  %1365 = vmatprep.subr.mxu0 0.0
  %1366 = vmatpush1.msra.mxu0 %v1328
  %1367 = vmatprep.subr.mxu0 0.0
  %1368 = vmatpush1.msra.mxu0 %v1326
  %1369 = vmatprep.subr.mxu0 0.0
  %1370 = vmatpush2.msra.mxu0 0.0
  %1371 = vmatprep.subr.mxu0 0.0
  %1372 = vmatpush2.msra.mxu0 0.0
  %1373 = vmatprep.subr.mxu0 0.0
  %1374 = vmatpush2.msra.mxu0 0.0
  %1375 = vmatprep.subr.mxu0 0.0
  %1376 = vmatpush2.msra.mxu0 0.0
  %1377 = vmatprep.subr.mxu0 0.0
  %1378 = vmatpush2.msra.mxu0 0.0
  %1379 = vmatprep.subr.mxu0 0.0
  %1380 = vmatpush2.msra.mxu0 0.0
  %1381 = vmatprep.subr.mxu0 0.0
  %1382 = vmatpush2.msra.mxu0 0.0
  %1383 = vmatprep.subr.mxu0 0.0
  %1384 = vmatpush2.msra.mxu0 0.0
  %1385 = vmatprep.subr.mxu0 0.0
  %1386 = vmatpush2.msra.mxu0 0.0
  %1387 = vmatprep.subr.mxu0 0.0
  %1388 = vmatpush2.msra.mxu0 0.0
  %1389 = vmatprep.subr.mxu0 0.0
  %1390 = vmatpush2.msra.mxu0 0.0
  %1391 = vmatprep.subr.mxu0 0.0
  %1392 = vmatpush2.msra.mxu0 0.0
  %1393 = vmatprep.subr.mxu0 0.0
  %1394 = vmatpush2.msra.mxu0 0.0
  %1395 = vmatprep.subr.mxu0 0.0
  %1396 = vmatpush2.msra.mxu0 0.0
  %1397 = vmatprep.subr.mxu0 0.0
  %1398 = vmatpush2.msra.mxu0 0.0
  %1399 = vmatprep.subr.mxu0 0.0
  %1400 = vmatpush2.msra.mxu0 0.0
  %1401 = vmatprep.mubr.f32.mxu0 0.0
  %1402 = vmatmul.mubr.f32.gmra.mxu0 %v1332
  %v1403 = vpop.f32.mrf.mxu0
  %v1404 = vadd.f32 0.0, %v1403
  %v1405 = vpop.f32.mrf.mxu0
  %1406 = vmatprep.mubr.f32.mxu0 0.0
  %1407 = vmatmul.mubr.f32.gmra.mxu0 %v1335
  %v1408 = vpop.f32.mrf.mxu0
  %v1409 = vadd.f32 0.0, %v1408
  %v1410 = vpop.f32.mrf.mxu0
  %1411 = vdwg.mxu0
  %v1412 = vadd.f32 %v1323, %v1404
  %v1413 = vadd.f32 %v1324, %v1409
  %1414 = vrot.lane.b32.xlu0 %v97, 80
  %v1415 = vpop.permute.xlu0 %1414
  %1416 = vrot.lane.b32.xlu0 %v102, 80
  %v1417 = vpop.permute.xlu0 %1416
  %v1421 = vsel %vm623, %v876, 0
  %v1424 = vsel %vm623, %v877, 0
  %1426 = vmatprep.subr.mxu0 0.0
  %1427 = vmatpush1.msra.mxu0 0.0
  %1428 = vmatprep.subr.mxu0 0.0
  %1429 = vmatpush1.msra.mxu0 0.0
  %1430 = vmatprep.subr.mxu0 0.0
  %1431 = vmatpush1.msra.mxu0 0.0
  %1432 = vmatprep.subr.mxu0 0.0
  %1433 = vmatpush1.msra.mxu0 0.0
  %1434 = vmatprep.subr.mxu0 0.0
  %1435 = vmatpush1.msra.mxu0 0.0
  %1436 = vmatprep.subr.mxu0 0.0
  %1437 = vmatpush1.msra.mxu0 0.0
  %1438 = vmatprep.subr.mxu0 0.0
  %1439 = vmatpush1.msra.mxu0 0.0
  %1440 = vmatprep.subr.mxu0 0.0
  %1441 = vmatpush1.msra.mxu0 0.0
  %1442 = vmatprep.subr.mxu0 0.0
  %1443 = vmatpush1.msra.mxu0 0.0
  %1444 = vmatprep.subr.mxu0 0.0
  %1445 = vmatpush1.msra.mxu0 0.0
  %1446 = vmatprep.subr.mxu0 0.0
  %1447 = vmatpush1.msra.mxu0 0.0
  %1448 = vmatprep.subr.mxu0 0.0
  %1449 = vmatpush1.msra.mxu0 0.0
  %1450 = vmatprep.subr.mxu0 0.0
  %1451 = vmatpush1.msra.mxu0 0.0
  %1452 = vmatprep.subr.mxu0 0.0
  %1453 = vmatpush1.msra.mxu0 0.0
  %1454 = vmatprep.subr.mxu0 0.0
  %1455 = vmatpush1.msra.mxu0 %v1417
  %1456 = vmatprep.subr.mxu0 0.0
  %1457 = vmatpush1.msra.mxu0 %v1415
  %1458 = vmatprep.subr.mxu0 0.0
  %1459 = vmatpush2.msra.mxu0 0.0
  %1460 = vmatprep.subr.mxu0 0.0
  %1461 = vmatpush2.msra.mxu0 0.0
  %1462 = vmatprep.subr.mxu0 0.0
  %1463 = vmatpush2.msra.mxu0 0.0
  %1464 = vmatprep.subr.mxu0 0.0
  %1465 = vmatpush2.msra.mxu0 0.0
  %1466 = vmatprep.subr.mxu0 0.0
  %1467 = vmatpush2.msra.mxu0 0.0
  %1468 = vmatprep.subr.mxu0 0.0
  %1469 = vmatpush2.msra.mxu0 0.0
  %1470 = vmatprep.subr.mxu0 0.0
  %1471 = vmatpush2.msra.mxu0 0.0
  %1472 = vmatprep.subr.mxu0 0.0
  %1473 = vmatpush2.msra.mxu0 0.0
  %1474 = vmatprep.subr.mxu0 0.0
  %1475 = vmatpush2.msra.mxu0 0.0
  %1476 = vmatprep.subr.mxu0 0.0
  %1477 = vmatpush2.msra.mxu0 0.0
  %1478 = vmatprep.subr.mxu0 0.0
  %1479 = vmatpush2.msra.mxu0 0.0
  %1480 = vmatprep.subr.mxu0 0.0
  %1481 = vmatpush2.msra.mxu0 0.0
  %1482 = vmatprep.subr.mxu0 0.0
  %1483 = vmatpush2.msra.mxu0 0.0
  %1484 = vmatprep.subr.mxu0 0.0
  %1485 = vmatpush2.msra.mxu0 0.0
  %1486 = vmatprep.subr.mxu0 0.0
  %1487 = vmatpush2.msra.mxu0 0.0
  %1488 = vmatprep.subr.mxu0 0.0
  %1489 = vmatpush2.msra.mxu0 0.0
  %1490 = vmatprep.mubr.f32.mxu0 0.0
  %1491 = vmatmul.mubr.f32.gmra.mxu0 %v1421
  %v1492 = vpop.f32.mrf.mxu0
  %v1493 = vadd.f32 0.0, %v1492
  %v1494 = vpop.f32.mrf.mxu0
  %1495 = vmatprep.mubr.f32.mxu0 0.0
  %1496 = vmatmul.mubr.f32.gmra.mxu0 %v1424
  %v1497 = vpop.f32.mrf.mxu0
  %v1498 = vadd.f32 0.0, %v1497
  %v1499 = vpop.f32.mrf.mxu0
  %1500 = vdwg.mxu0
  %v1501 = vadd.f32 %v1412, %v1493
  %v1502 = vadd.f32 %v1413, %v1498
  %1503 = vrot.lane.b32.xlu0 %v97, 72
  %v1504 = vpop.permute.xlu0 %1503
  %1505 = vrot.lane.b32.xlu0 %v102, 72
  %v1506 = vpop.permute.xlu0 %1505
  %v1510 = vsel %vm623, %v878, 0
  %v1513 = vsel %vm623, %v879, 0
  %1515 = vmatprep.subr.mxu0 0.0
  %1516 = vmatpush1.msra.mxu0 0.0
  %1517 = vmatprep.subr.mxu0 0.0
  %1518 = vmatpush1.msra.mxu0 0.0
  %1519 = vmatprep.subr.mxu0 0.0
  %1520 = vmatpush1.msra.mxu0 0.0
  %1521 = vmatprep.subr.mxu0 0.0
  %1522 = vmatpush1.msra.mxu0 0.0
  %1523 = vmatprep.subr.mxu0 0.0
  %1524 = vmatpush1.msra.mxu0 0.0
  %1525 = vmatprep.subr.mxu0 0.0
  %1526 = vmatpush1.msra.mxu0 0.0
  %1527 = vmatprep.subr.mxu0 0.0
  %1528 = vmatpush1.msra.mxu0 0.0
  %1529 = vmatprep.subr.mxu0 0.0
  %1530 = vmatpush1.msra.mxu0 0.0
  %1531 = vmatprep.subr.mxu0 0.0
  %1532 = vmatpush1.msra.mxu0 0.0
  %1533 = vmatprep.subr.mxu0 0.0
  %1534 = vmatpush1.msra.mxu0 0.0
  %1535 = vmatprep.subr.mxu0 0.0
  %1536 = vmatpush1.msra.mxu0 0.0
  %1537 = vmatprep.subr.mxu0 0.0
  %1538 = vmatpush1.msra.mxu0 0.0
  %1539 = vmatprep.subr.mxu0 0.0
  %1540 = vmatpush1.msra.mxu0 0.0
  %1541 = vmatprep.subr.mxu0 0.0
  %1542 = vmatpush1.msra.mxu0 0.0
  %1543 = vmatprep.subr.mxu0 0.0
  %1544 = vmatpush1.msra.mxu0 %v1506
  %1545 = vmatprep.subr.mxu0 0.0
  %1546 = vmatpush1.msra.mxu0 %v1504
  %1547 = vmatprep.subr.mxu0 0.0
  %1548 = vmatpush2.msra.mxu0 0.0
  %1549 = vmatprep.subr.mxu0 0.0
  %1550 = vmatpush2.msra.mxu0 0.0
  %1551 = vmatprep.subr.mxu0 0.0
  %1552 = vmatpush2.msra.mxu0 0.0
  %1553 = vmatprep.subr.mxu0 0.0
  %1554 = vmatpush2.msra.mxu0 0.0
  %1555 = vmatprep.subr.mxu0 0.0
  %1556 = vmatpush2.msra.mxu0 0.0
  %1557 = vmatprep.subr.mxu0 0.0
  %1558 = vmatpush2.msra.mxu0 0.0
  %1559 = vmatprep.subr.mxu0 0.0
  %1560 = vmatpush2.msra.mxu0 0.0
  %1561 = vmatprep.subr.mxu0 0.0
  %1562 = vmatpush2.msra.mxu0 0.0
  %1563 = vmatprep.subr.mxu0 0.0
  %1564 = vmatpush2.msra.mxu0 0.0
  %1565 = vmatprep.subr.mxu0 0.0
  %1566 = vmatpush2.msra.mxu0 0.0
  %1567 = vmatprep.subr.mxu0 0.0
  %1568 = vmatpush2.msra.mxu0 0.0
  %1569 = vmatprep.subr.mxu0 0.0
  %1570 = vmatpush2.msra.mxu0 0.0
  %1571 = vmatprep.subr.mxu0 0.0
  %1572 = vmatpush2.msra.mxu0 0.0
  %1573 = vmatprep.subr.mxu0 0.0
  %1574 = vmatpush2.msra.mxu0 0.0
  %1575 = vmatprep.subr.mxu0 0.0
  %1576 = vmatpush2.msra.mxu0 0.0
  %1577 = vmatprep.subr.mxu0 0.0
  %1578 = vmatpush2.msra.mxu0 0.0
  %1579 = vmatprep.mubr.f32.mxu0 0.0
  %1580 = vmatmul.mubr.f32.gmra.mxu0 %v1510
  %v1581 = vpop.f32.mrf.mxu0
  %v1582 = vadd.f32 0.0, %v1581
  %v1583 = vpop.f32.mrf.mxu0
  %1584 = vmatprep.mubr.f32.mxu0 0.0
  %1585 = vmatmul.mubr.f32.gmra.mxu0 %v1513
  %v1586 = vpop.f32.mrf.mxu0
  %v1587 = vadd.f32 0.0, %v1586
  %v1588 = vpop.f32.mrf.mxu0
  %1589 = vdwg.mxu0
  %v1590 = vadd.f32 %v1501, %v1582
  %v1591 = vadd.f32 %v1502, %v1587
  %1592 = vrot.lane.b32.xlu0 %v97, 64
  %v1593 = vpop.permute.xlu0 %1592
  %1594 = vrot.lane.b32.xlu0 %v102, 64
  %v1595 = vpop.permute.xlu0 %1594
  %v1599 = vsel %vm623, %v880, 0
  %v1602 = vsel %vm623, %v881, 0
  %1604 = vmatprep.subr.mxu0 0.0
  %1605 = vmatpush1.msra.mxu0 0.0
  %1606 = vmatprep.subr.mxu0 0.0
  %1607 = vmatpush1.msra.mxu0 0.0
  %1608 = vmatprep.subr.mxu0 0.0
  %1609 = vmatpush1.msra.mxu0 0.0
  %1610 = vmatprep.subr.mxu0 0.0
  %1611 = vmatpush1.msra.mxu0 0.0
  %1612 = vmatprep.subr.mxu0 0.0
  %1613 = vmatpush1.msra.mxu0 0.0
  %1614 = vmatprep.subr.mxu0 0.0
  %1615 = vmatpush1.msra.mxu0 0.0
  %1616 = vmatprep.subr.mxu0 0.0
  %1617 = vmatpush1.msra.mxu0 0.0
  %1618 = vmatprep.subr.mxu0 0.0
  %1619 = vmatpush1.msra.mxu0 0.0
  %1620 = vmatprep.subr.mxu0 0.0
  %1621 = vmatpush1.msra.mxu0 0.0
  %1622 = vmatprep.subr.mxu0 0.0
  %1623 = vmatpush1.msra.mxu0 0.0
  %1624 = vmatprep.subr.mxu0 0.0
  %1625 = vmatpush1.msra.mxu0 0.0
  %1626 = vmatprep.subr.mxu0 0.0
  %1627 = vmatpush1.msra.mxu0 0.0
  %1628 = vmatprep.subr.mxu0 0.0
  %1629 = vmatpush1.msra.mxu0 0.0
  %1630 = vmatprep.subr.mxu0 0.0
  %1631 = vmatpush1.msra.mxu0 0.0
  %1632 = vmatprep.subr.mxu0 0.0
  %1633 = vmatpush1.msra.mxu0 %v1595
  %1634 = vmatprep.subr.mxu0 0.0
  %1635 = vmatpush1.msra.mxu0 %v1593
  %1636 = vmatprep.subr.mxu0 0.0
  %1637 = vmatpush2.msra.mxu0 0.0
  %1638 = vmatprep.subr.mxu0 0.0
  %1639 = vmatpush2.msra.mxu0 0.0
  %1640 = vmatprep.subr.mxu0 0.0
  %1641 = vmatpush2.msra.mxu0 0.0
  %1642 = vmatprep.subr.mxu0 0.0
  %1643 = vmatpush2.msra.mxu0 0.0
  %1644 = vmatprep.subr.mxu0 0.0
  %1645 = vmatpush2.msra.mxu0 0.0
  %1646 = vmatprep.subr.mxu0 0.0
  %1647 = vmatpush2.msra.mxu0 0.0
  %1648 = vmatprep.subr.mxu0 0.0
  %1649 = vmatpush2.msra.mxu0 0.0
  %1650 = vmatprep.subr.mxu0 0.0
  %1651 = vmatpush2.msra.mxu0 0.0
  %1652 = vmatprep.subr.mxu0 0.0
  %1653 = vmatpush2.msra.mxu0 0.0
  %1654 = vmatprep.subr.mxu0 0.0
  %1655 = vmatpush2.msra.mxu0 0.0
  %1656 = vmatprep.subr.mxu0 0.0
  %1657 = vmatpush2.msra.mxu0 0.0
  %1658 = vmatprep.subr.mxu0 0.0
  %1659 = vmatpush2.msra.mxu0 0.0
  %1660 = vmatprep.subr.mxu0 0.0
  %1661 = vmatpush2.msra.mxu0 0.0
  %1662 = vmatprep.subr.mxu0 0.0
  %1663 = vmatpush2.msra.mxu0 0.0
  %1664 = vmatprep.subr.mxu0 0.0
  %1665 = vmatpush2.msra.mxu0 0.0
  %1666 = vmatprep.subr.mxu0 0.0
  %1667 = vmatpush2.msra.mxu0 0.0
  %1668 = vmatprep.mubr.f32.mxu0 0.0
  %1669 = vmatmul.mubr.f32.gmra.mxu0 %v1599
  %v1670 = vpop.f32.mrf.mxu0
  %v1671 = vadd.f32 0.0, %v1670
  %v1672 = vpop.f32.mrf.mxu0
  %1673 = vmatprep.mubr.f32.mxu0 0.0
  %1674 = vmatmul.mubr.f32.gmra.mxu0 %v1602
  %v1675 = vpop.f32.mrf.mxu0
  %v1676 = vadd.f32 0.0, %v1675
  %v1677 = vpop.f32.mrf.mxu0
  %1678 = vdwg.mxu0
  %v1679 = vadd.f32 %v1590, %v1671
  %v1680 = vadd.f32 %v1591, %v1676
  %1681 = vrot.lane.b32.xlu0 %v97, 56
  %v1682 = vpop.permute.xlu0 %1681
  %1683 = vrot.lane.b32.xlu0 %v102, 56
  %v1684 = vpop.permute.xlu0 %1683
  %v1688 = vsel %vm623, %v882, 0
  %v1691 = vsel %vm623, %v883, 0
  %1693 = vmatprep.subr.mxu0 0.0
  %1694 = vmatpush1.msra.mxu0 0.0
  %1695 = vmatprep.subr.mxu0 0.0
  %1696 = vmatpush1.msra.mxu0 0.0
  %1697 = vmatprep.subr.mxu0 0.0
  %1698 = vmatpush1.msra.mxu0 0.0
  %1699 = vmatprep.subr.mxu0 0.0
  %1700 = vmatpush1.msra.mxu0 0.0
  %1701 = vmatprep.subr.mxu0 0.0
  %1702 = vmatpush1.msra.mxu0 0.0
  %1703 = vmatprep.subr.mxu0 0.0
  %1704 = vmatpush1.msra.mxu0 0.0
  %1705 = vmatprep.subr.mxu0 0.0
  %1706 = vmatpush1.msra.mxu0 0.0
  %1707 = vmatprep.subr.mxu0 0.0
  %1708 = vmatpush1.msra.mxu0 0.0
  %1709 = vmatprep.subr.mxu0 0.0
  %1710 = vmatpush1.msra.mxu0 0.0
  %1711 = vmatprep.subr.mxu0 0.0
  %1712 = vmatpush1.msra.mxu0 0.0
  %1713 = vmatprep.subr.mxu0 0.0
  %1714 = vmatpush1.msra.mxu0 0.0
  %1715 = vmatprep.subr.mxu0 0.0
  %1716 = vmatpush1.msra.mxu0 0.0
  %1717 = vmatprep.subr.mxu0 0.0
  %1718 = vmatpush1.msra.mxu0 0.0
  %1719 = vmatprep.subr.mxu0 0.0
  %1720 = vmatpush1.msra.mxu0 0.0
  %1721 = vmatprep.subr.mxu0 0.0
  %1722 = vmatpush1.msra.mxu0 %v1684
  %1723 = vmatprep.subr.mxu0 0.0
  %1724 = vmatpush1.msra.mxu0 %v1682
  %1725 = vmatprep.subr.mxu0 0.0
  %1726 = vmatpush2.msra.mxu0 0.0
  %1727 = vmatprep.subr.mxu0 0.0
  %1728 = vmatpush2.msra.mxu0 0.0
  %1729 = vmatprep.subr.mxu0 0.0
  %1730 = vmatpush2.msra.mxu0 0.0
  %1731 = vmatprep.subr.mxu0 0.0
  %1732 = vmatpush2.msra.mxu0 0.0
  %1733 = vmatprep.subr.mxu0 0.0
  %1734 = vmatpush2.msra.mxu0 0.0
  %1735 = vmatprep.subr.mxu0 0.0
  %1736 = vmatpush2.msra.mxu0 0.0
  %1737 = vmatprep.subr.mxu0 0.0
  %1738 = vmatpush2.msra.mxu0 0.0
  %1739 = vmatprep.subr.mxu0 0.0
  %1740 = vmatpush2.msra.mxu0 0.0
  %1741 = vmatprep.subr.mxu0 0.0
  %1742 = vmatpush2.msra.mxu0 0.0
  %1743 = vmatprep.subr.mxu0 0.0
  %1744 = vmatpush2.msra.mxu0 0.0
  %1745 = vmatprep.subr.mxu0 0.0
  %1746 = vmatpush2.msra.mxu0 0.0
  %1747 = vmatprep.subr.mxu0 0.0
  %1748 = vmatpush2.msra.mxu0 0.0
  %1749 = vmatprep.subr.mxu0 0.0
  %1750 = vmatpush2.msra.mxu0 0.0
  %1751 = vmatprep.subr.mxu0 0.0
  %1752 = vmatpush2.msra.mxu0 0.0
  %1753 = vmatprep.subr.mxu0 0.0
  %1754 = vmatpush2.msra.mxu0 0.0
  %1755 = vmatprep.subr.mxu0 0.0
  %1756 = vmatpush2.msra.mxu0 0.0
  %1757 = vmatprep.mubr.f32.mxu0 0.0
  %1758 = vmatmul.mubr.f32.gmra.mxu0 %v1688
  %v1759 = vpop.f32.mrf.mxu0
  %v1760 = vadd.f32 0.0, %v1759
  %v1761 = vpop.f32.mrf.mxu0
  %1762 = vmatprep.mubr.f32.mxu0 0.0
  %1763 = vmatmul.mubr.f32.gmra.mxu0 %v1691
  %v1764 = vpop.f32.mrf.mxu0
  %v1765 = vadd.f32 0.0, %v1764
  %v1766 = vpop.f32.mrf.mxu0
  %1767 = vdwg.mxu0
  %v1768 = vadd.f32 %v1679, %v1760
  %v1769 = vadd.f32 %v1680, %v1765
  %1770 = vrot.lane.b32.xlu0 %v97, 48
  %v1771 = vpop.permute.xlu0 %1770
  %1772 = vrot.lane.b32.xlu0 %v102, 48
  %v1773 = vpop.permute.xlu0 %1772
  %v1777 = vsel %vm623, %v884, 0
  %v1780 = vsel %vm623, %v885, 0
  %1782 = vmatprep.subr.mxu0 0.0
  %1783 = vmatpush1.msra.mxu0 0.0
  %1784 = vmatprep.subr.mxu0 0.0
  %1785 = vmatpush1.msra.mxu0 0.0
  %1786 = vmatprep.subr.mxu0 0.0
  %1787 = vmatpush1.msra.mxu0 0.0
  %1788 = vmatprep.subr.mxu0 0.0
  %1789 = vmatpush1.msra.mxu0 0.0
  %1790 = vmatprep.subr.mxu0 0.0
  %1791 = vmatpush1.msra.mxu0 0.0
  %1792 = vmatprep.subr.mxu0 0.0
  %1793 = vmatpush1.msra.mxu0 0.0
  %1794 = vmatprep.subr.mxu0 0.0
  %1795 = vmatpush1.msra.mxu0 0.0
  %1796 = vmatprep.subr.mxu0 0.0
  %1797 = vmatpush1.msra.mxu0 0.0
  %1798 = vmatprep.subr.mxu0 0.0
  %1799 = vmatpush1.msra.mxu0 0.0
  %1800 = vmatprep.subr.mxu0 0.0
  %1801 = vmatpush1.msra.mxu0 0.0
  %1802 = vmatprep.subr.mxu0 0.0
  %1803 = vmatpush1.msra.mxu0 0.0
  %1804 = vmatprep.subr.mxu0 0.0
  %1805 = vmatpush1.msra.mxu0 0.0
  %1806 = vmatprep.subr.mxu0 0.0
  %1807 = vmatpush1.msra.mxu0 0.0
  %1808 = vmatprep.subr.mxu0 0.0
  %1809 = vmatpush1.msra.mxu0 0.0
  %1810 = vmatprep.subr.mxu0 0.0
  %1811 = vmatpush1.msra.mxu0 %v1773
  %1812 = vmatprep.subr.mxu0 0.0
  %1813 = vmatpush1.msra.mxu0 %v1771
  %1814 = vmatprep.subr.mxu0 0.0
  %1815 = vmatpush2.msra.mxu0 0.0
  %1816 = vmatprep.subr.mxu0 0.0
  %1817 = vmatpush2.msra.mxu0 0.0
  %1818 = vmatprep.subr.mxu0 0.0
  %1819 = vmatpush2.msra.mxu0 0.0
  %1820 = vmatprep.subr.mxu0 0.0
  %1821 = vmatpush2.msra.mxu0 0.0
  %1822 = vmatprep.subr.mxu0 0.0
  %1823 = vmatpush2.msra.mxu0 0.0
  %1824 = vmatprep.subr.mxu0 0.0
  %1825 = vmatpush2.msra.mxu0 0.0
  %1826 = vmatprep.subr.mxu0 0.0
  %1827 = vmatpush2.msra.mxu0 0.0
  %1828 = vmatprep.subr.mxu0 0.0
  %1829 = vmatpush2.msra.mxu0 0.0
  %1830 = vmatprep.subr.mxu0 0.0
  %1831 = vmatpush2.msra.mxu0 0.0
  %1832 = vmatprep.subr.mxu0 0.0
  %1833 = vmatpush2.msra.mxu0 0.0
  %1834 = vmatprep.subr.mxu0 0.0
  %1835 = vmatpush2.msra.mxu0 0.0
  %1836 = vmatprep.subr.mxu0 0.0
  %1837 = vmatpush2.msra.mxu0 0.0
  %1838 = vmatprep.subr.mxu0 0.0
  %1839 = vmatpush2.msra.mxu0 0.0
  %1840 = vmatprep.subr.mxu0 0.0
  %1841 = vmatpush2.msra.mxu0 0.0
  %1842 = vmatprep.subr.mxu0 0.0
  %1843 = vmatpush2.msra.mxu0 0.0
  %1844 = vmatprep.subr.mxu0 0.0
  %1845 = vmatpush2.msra.mxu0 0.0
  %1846 = vmatprep.mubr.f32.mxu0 0.0
  %1847 = vmatmul.mubr.f32.gmra.mxu0 %v1777
  %v1848 = vpop.f32.mrf.mxu0
  %v1849 = vadd.f32 0.0, %v1848
  %v1850 = vpop.f32.mrf.mxu0
  %1851 = vmatprep.mubr.f32.mxu0 0.0
  %1852 = vmatmul.mubr.f32.gmra.mxu0 %v1780
  %v1853 = vpop.f32.mrf.mxu0
  %v1854 = vadd.f32 0.0, %v1853
  %v1855 = vpop.f32.mrf.mxu0
  %1856 = vdwg.mxu0
  %v1857 = vadd.f32 %v1768, %v1849
  %v1858 = vadd.f32 %v1769, %v1854
  %1859 = vrot.lane.b32.xlu0 %v97, 40
  %v1860 = vpop.permute.xlu0 %1859
  %1861 = vrot.lane.b32.xlu0 %v102, 40
  %v1862 = vpop.permute.xlu0 %1861
  %v1866 = vsel %vm623, %v886, 0
  %v1869 = vsel %vm623, %v887, 0
  %1871 = vmatprep.subr.mxu0 0.0
  %1872 = vmatpush1.msra.mxu0 0.0
  %1873 = vmatprep.subr.mxu0 0.0
  %1874 = vmatpush1.msra.mxu0 0.0
  %1875 = vmatprep.subr.mxu0 0.0
  %1876 = vmatpush1.msra.mxu0 0.0
  %1877 = vmatprep.subr.mxu0 0.0
  %1878 = vmatpush1.msra.mxu0 0.0
  %1879 = vmatprep.subr.mxu0 0.0
  %1880 = vmatpush1.msra.mxu0 0.0
  %1881 = vmatprep.subr.mxu0 0.0
  %1882 = vmatpush1.msra.mxu0 0.0
  %1883 = vmatprep.subr.mxu0 0.0
  %1884 = vmatpush1.msra.mxu0 0.0
  %1885 = vmatprep.subr.mxu0 0.0
  %1886 = vmatpush1.msra.mxu0 0.0
  %1887 = vmatprep.subr.mxu0 0.0
  %1888 = vmatpush1.msra.mxu0 0.0
  %1889 = vmatprep.subr.mxu0 0.0
  %1890 = vmatpush1.msra.mxu0 0.0
  %1891 = vmatprep.subr.mxu0 0.0
  %1892 = vmatpush1.msra.mxu0 0.0
  %1893 = vmatprep.subr.mxu0 0.0
  %1894 = vmatpush1.msra.mxu0 0.0
  %1895 = vmatprep.subr.mxu0 0.0
  %1896 = vmatpush1.msra.mxu0 0.0
  %1897 = vmatprep.subr.mxu0 0.0
  %1898 = vmatpush1.msra.mxu0 0.0
  %1899 = vmatprep.subr.mxu0 0.0
  %1900 = vmatpush1.msra.mxu0 %v1862
  %1901 = vmatprep.subr.mxu0 0.0
  %1902 = vmatpush1.msra.mxu0 %v1860
  %1903 = vmatprep.subr.mxu0 0.0
  %1904 = vmatpush2.msra.mxu0 0.0
  %1905 = vmatprep.subr.mxu0 0.0
  %1906 = vmatpush2.msra.mxu0 0.0
  %1907 = vmatprep.subr.mxu0 0.0
  %1908 = vmatpush2.msra.mxu0 0.0
  %1909 = vmatprep.subr.mxu0 0.0
  %1910 = vmatpush2.msra.mxu0 0.0
  %1911 = vmatprep.subr.mxu0 0.0
  %1912 = vmatpush2.msra.mxu0 0.0
  %1913 = vmatprep.subr.mxu0 0.0
  %1914 = vmatpush2.msra.mxu0 0.0
  %1915 = vmatprep.subr.mxu0 0.0
  %1916 = vmatpush2.msra.mxu0 0.0
  %1917 = vmatprep.subr.mxu0 0.0
  %1918 = vmatpush2.msra.mxu0 0.0
  %1919 = vmatprep.subr.mxu0 0.0
  %1920 = vmatpush2.msra.mxu0 0.0
  %1921 = vmatprep.subr.mxu0 0.0
  %1922 = vmatpush2.msra.mxu0 0.0
  %1923 = vmatprep.subr.mxu0 0.0
  %1924 = vmatpush2.msra.mxu0 0.0
  %1925 = vmatprep.subr.mxu0 0.0
  %1926 = vmatpush2.msra.mxu0 0.0
  %1927 = vmatprep.subr.mxu0 0.0
  %1928 = vmatpush2.msra.mxu0 0.0
  %1929 = vmatprep.subr.mxu0 0.0
  %1930 = vmatpush2.msra.mxu0 0.0
  %1931 = vmatprep.subr.mxu0 0.0
  %1932 = vmatpush2.msra.mxu0 0.0
  %1933 = vmatprep.subr.mxu0 0.0
  %1934 = vmatpush2.msra.mxu0 0.0
  %1935 = vmatprep.mubr.f32.mxu0 0.0
  %1936 = vmatmul.mubr.f32.gmra.mxu0 %v1866
  %v1937 = vpop.f32.mrf.mxu0
  %v1938 = vadd.f32 0.0, %v1937
  %v1939 = vpop.f32.mrf.mxu0
  %1940 = vmatprep.mubr.f32.mxu0 0.0
  %1941 = vmatmul.mubr.f32.gmra.mxu0 %v1869
  %v1942 = vpop.f32.mrf.mxu0
  %v1943 = vadd.f32 0.0, %v1942
  %v1944 = vpop.f32.mrf.mxu0
  %1945 = vdwg.mxu0
  %v1946 = vadd.f32 %v1857, %v1938
  %v1947 = vadd.f32 %v1858, %v1943
  %v1948 = vmul.f32 %v1946, 0.083333336
  %v1949 = vmul.f32 %v1947, 0.083333336
  %v1950 = vlaneseq
  %v1951 = vshrl.u32 %v1950, 7
  %v1952 = vsub.s32 0, %v1951
  %v1953 = vrot.slane %v22, %v1952
  %v1954 = vadd.f32 %v1948, %v1953
  %v1955 = vadd.f32 %v1949, %v1953
  %v1956 = vadd.f32 %v14, %v1954
  %v1957 = vadd.f32 %v15, %v1955
  %v1958 = vmax.f32 %v1956, 0.0
  %v1959 = vmax.f32 %v1957, 0.0
  %v1960 = vlaneseq
  %v1961 = vshrl.u32 %v1960, 7
  %v1962 = vsub.s32 1, %v1961
  %v1963 = vrot.slane %v22, %v1962
  %1965 = vrot.lane.b32.xlu0 %v18, 8
  %v1966 = vpop.permute.xlu0 %1965
  %1967 = vrot.lane.b32.xlu0 %v19, 8
  %v1968 = vpop.permute.xlu0 %1967
  %v1969 = vsel %vm23, %v1966, %v1968
  %v1972 = vsel %vm23, %v1958, 0
  %v1975 = vsel %vm23, %v1959, 0
  %1977 = vmatprep.subr.mxu0 0.0
  %1978 = vmatpush1.msra.mxu0 0.0
  %1979 = vmatprep.subr.mxu0 0.0
  %1980 = vmatpush1.msra.mxu0 0.0
  %1981 = vmatprep.subr.mxu0 0.0
  %1982 = vmatpush1.msra.mxu0 0.0
  %1983 = vmatprep.subr.mxu0 0.0
  %1984 = vmatpush1.msra.mxu0 0.0
  %1985 = vmatprep.subr.mxu0 0.0
  %1986 = vmatpush1.msra.mxu0 0.0
  %1987 = vmatprep.subr.mxu0 0.0
  %1988 = vmatpush1.msra.mxu0 0.0
  %1989 = vmatprep.subr.mxu0 0.0
  %1990 = vmatpush1.msra.mxu0 0.0
  %1991 = vmatprep.subr.mxu0 0.0
  %1992 = vmatpush1.msra.mxu0 0.0
  %1993 = vmatprep.subr.mxu0 0.0
  %1994 = vmatpush1.msra.mxu0 0.0
  %1995 = vmatprep.subr.mxu0 0.0
  %1996 = vmatpush1.msra.mxu0 0.0
  %1997 = vmatprep.subr.mxu0 0.0
  %1998 = vmatpush1.msra.mxu0 0.0
  %1999 = vmatprep.subr.mxu0 0.0
  %2000 = vmatpush1.msra.mxu0 0.0
  %2001 = vmatprep.subr.mxu0 0.0
  %2002 = vmatpush1.msra.mxu0 0.0
  %2003 = vmatprep.subr.mxu0 0.0
  %2004 = vmatpush1.msra.mxu0 0.0
  %2005 = vmatprep.subr.mxu0 0.0
  %2006 = vmatpush1.msra.mxu0 0.0
  %2007 = vmatprep.subr.mxu0 0.0
  %2008 = vmatpush1.msra.mxu0 %v1969
  %2009 = vmatprep.subr.mxu0 0.0
  %2010 = vmatpush2.msra.mxu0 0.0
  %2011 = vmatprep.subr.mxu0 0.0
  %2012 = vmatpush2.msra.mxu0 0.0
  %2013 = vmatprep.subr.mxu0 0.0
  %2014 = vmatpush2.msra.mxu0 0.0
  %2015 = vmatprep.subr.mxu0 0.0
  %2016 = vmatpush2.msra.mxu0 0.0
  %2017 = vmatprep.subr.mxu0 0.0
  %2018 = vmatpush2.msra.mxu0 0.0
  %2019 = vmatprep.subr.mxu0 0.0
  %2020 = vmatpush2.msra.mxu0 0.0
  %2021 = vmatprep.subr.mxu0 0.0
  %2022 = vmatpush2.msra.mxu0 0.0
  %2023 = vmatprep.subr.mxu0 0.0
  %2024 = vmatpush2.msra.mxu0 0.0
  %2025 = vmatprep.subr.mxu0 0.0
  %2026 = vmatpush2.msra.mxu0 0.0
  %2027 = vmatprep.subr.mxu0 0.0
  %2028 = vmatpush2.msra.mxu0 0.0
  %2029 = vmatprep.subr.mxu0 0.0
  %2030 = vmatpush2.msra.mxu0 0.0
  %2031 = vmatprep.subr.mxu0 0.0
  %2032 = vmatpush2.msra.mxu0 0.0
  %2033 = vmatprep.subr.mxu0 0.0
  %2034 = vmatpush2.msra.mxu0 0.0
  %2035 = vmatprep.subr.mxu0 0.0
  %2036 = vmatpush2.msra.mxu0 0.0
  %2037 = vmatprep.subr.mxu0 0.0
  %2038 = vmatpush2.msra.mxu0 0.0
  %2039 = vmatprep.subr.mxu0 0.0
  %2040 = vmatpush2.msra.mxu0 0.0
  %2041 = vmatprep.mubr.f32.mxu0 0.0
  %2042 = vmatmul.mubr.f32.gmra.mxu0 %v1972
  %v2043 = vpop.f32.mrf.mxu0
  %v2044 = vadd.f32 %v1963, %v2043
  %v2045 = vpop.f32.mrf.mxu0
  %2046 = vmatprep.mubr.f32.mxu0 0.0
  %2047 = vmatmul.mubr.f32.gmra.mxu0 %v1975
  %v2048 = vpop.f32.mrf.mxu0
  %v2049 = vadd.f32 %v1963, %v2048
  %v2050 = vpop.f32.mrf.mxu0
  %2051 = vdwg.mxu0
  %v2052 = vmax.f32 %v2044, 0.0
  %v2053 = vmax.f32 %v2049, 0.0
  %v2054 = vlaneseq
  %v2055 = vshrl.u32 %v2054, 7
  %v2056 = vsub.s32 2, %v2055
  %v2057 = vrot.slane %v22, %v2056
  %v2059 = vsel %vm623, %v2052, 0
  %v2062 = vsel %vm623, %v2053, 0
  %2064 = vmatprep.subr.mxu0 0.0
  %2065 = vmatpush1.msra.mxu0 0.0
  %2066 = vmatprep.subr.mxu0 0.0
  %2067 = vmatpush1.msra.mxu0 0.0
  %2068 = vmatprep.subr.mxu0 0.0
  %2069 = vmatpush1.msra.mxu0 0.0
  %2070 = vmatprep.subr.mxu0 0.0
  %2071 = vmatpush1.msra.mxu0 0.0
  %2072 = vmatprep.subr.mxu0 0.0
  %2073 = vmatpush1.msra.mxu0 0.0
  %2074 = vmatprep.subr.mxu0 0.0
  %2075 = vmatpush1.msra.mxu0 0.0
  %2076 = vmatprep.subr.mxu0 0.0
  %2077 = vmatpush1.msra.mxu0 0.0
  %2078 = vmatprep.subr.mxu0 0.0
  %2079 = vmatpush1.msra.mxu0 0.0
  %2080 = vmatprep.subr.mxu0 0.0
  %2081 = vmatpush1.msra.mxu0 0.0
  %2082 = vmatprep.subr.mxu0 0.0
  %2083 = vmatpush1.msra.mxu0 0.0
  %2084 = vmatprep.subr.mxu0 0.0
  %2085 = vmatpush1.msra.mxu0 0.0
  %2086 = vmatprep.subr.mxu0 0.0
  %2087 = vmatpush1.msra.mxu0 0.0
  %2088 = vmatprep.subr.mxu0 0.0
  %2089 = vmatpush1.msra.mxu0 0.0
  %2090 = vmatprep.subr.mxu0 0.0
  %2091 = vmatpush1.msra.mxu0 0.0
  %2092 = vmatprep.subr.mxu0 0.0
  %2093 = vmatpush1.msra.mxu0 %v21
  %2094 = vmatprep.subr.mxu0 0.0
  %2095 = vmatpush1.msra.mxu0 %v20
  %2096 = vmatprep.subr.mxu0 0.0
  %2097 = vmatpush2.msra.mxu0 0.0
  %2098 = vmatprep.subr.mxu0 0.0
  %2099 = vmatpush2.msra.mxu0 0.0
  %2100 = vmatprep.subr.mxu0 0.0
  %2101 = vmatpush2.msra.mxu0 0.0
  %2102 = vmatprep.subr.mxu0 0.0
  %2103 = vmatpush2.msra.mxu0 0.0
  %2104 = vmatprep.subr.mxu0 0.0
  %2105 = vmatpush2.msra.mxu0 0.0
  %2106 = vmatprep.subr.mxu0 0.0
  %2107 = vmatpush2.msra.mxu0 0.0
  %2108 = vmatprep.subr.mxu0 0.0
  %2109 = vmatpush2.msra.mxu0 0.0
  %2110 = vmatprep.subr.mxu0 0.0
  %2111 = vmatpush2.msra.mxu0 0.0
  %2112 = vmatprep.subr.mxu0 0.0
  %2113 = vmatpush2.msra.mxu0 0.0
  %2114 = vmatprep.subr.mxu0 0.0
  %2115 = vmatpush2.msra.mxu0 0.0
  %2116 = vmatprep.subr.mxu0 0.0
  %2117 = vmatpush2.msra.mxu0 0.0
  %2118 = vmatprep.subr.mxu0 0.0
  %2119 = vmatpush2.msra.mxu0 0.0
  %2120 = vmatprep.subr.mxu0 0.0
  %2121 = vmatpush2.msra.mxu0 0.0
  %2122 = vmatprep.subr.mxu0 0.0
  %2123 = vmatpush2.msra.mxu0 0.0
  %2124 = vmatprep.subr.mxu0 0.0
  %2125 = vmatpush2.msra.mxu0 0.0
  %2126 = vmatprep.subr.mxu0 0.0
  %2127 = vmatpush2.msra.mxu0 0.0
  %2128 = vmatprep.mubr.f32.mxu0 0.0
  %2129 = vmatmul.mubr.f32.gmra.mxu0 %v2059
  %v2130 = vpop.f32.mrf.mxu0
  %v2131 = vadd.f32 %v2057, %v2130
  %v2132 = vpop.f32.mrf.mxu0
  %2133 = vmatprep.mubr.f32.mxu0 0.0
  %2134 = vmatmul.mubr.f32.gmra.mxu0 %v2062
  %v2135 = vpop.f32.mrf.mxu0
  %v2136 = vadd.f32 %v2057, %v2135
  %v2137 = vpop.f32.mrf.mxu0
  %2138 = vdwg.mxu0
  %v2139 = vadd.f32 %v1958, %v2131
  %v2140 = vadd.f32 %v1959, %v2136
  %v2141 = vmax.f32 %v2139, 0.0
  %v2142 = vmax.f32 %v2140, 0.0
  %2143 = vst.msk [vmem:[%s3] sm:$0xff] %vm23, %v2141
  %2144 = vst.msk [vmem:[%s3 + $0x8] sm:$0xff] %vm23, %v2142
  // Predicated region
  $region14: #{encoder_block.1} parent=0 // pred_check
    _
  $region15: #{encoder_block.1} parent=0 // pred_check_branch
    %2146 = sbr.rel (0) target = $region17
  $region16: #{encoder_block.1} parent=0 // pred_region
    _
  $region17: #{encoder_block.1} parent=0 // pred_fallthru
    _
  // Predicated region
  $region18: #{encoder_block.1} parent=0 // pred_check
    _
  $region19: #{encoder_block.1} parent=0 // pred_check_branch
    %2148 = sbr.rel (0) target = $region21
  $region20: #{encoder_block.1} parent=0 // pred_region
    _
  $region21: #{encoder_block.1} parent=0 // pred_fallthru
    _

</llo_original>
